<compile_context>
chip_gen: v7x
topology: tpu7x:2x2x1
jax: 0.10.0
libtpu: 0.0.40
codegen_flags: <defaults>
</compile_context>

<pallas_src>
import math
from functools import partial

import numpy as np
import jax
import jax.numpy as jnp
from jax import lax
from jax.experimental import pallas as pl
from jax.experimental.pallas import tpu as pltpu


def _pos_embed_kernel(ycoef_ref, xconst_ref, sel_ref, o_ref, *, th):
    """Grid = (num_h_tiles,).

    ycoef_ref, xconst_ref, sel_ref : (1, WDp)  per-lane coefficient rows
    o_ref                          : (B, TH, WDp)

    out[b, h, l] = sel[l] ? sin((h0+h+1) * ycoef[l] + xconst[l])
                          : cos((h0+h+1) * ycoef[l] + xconst[l])
    (identical for every b — broadcast once, stored for all batch slices).
    """
    hi = pl.program_id(0)  # top level only (safe for interpret + Mosaic)
    B, TH, WDp = o_ref.shape

    row = lax.broadcasted_iota(jnp.int32, (TH, WDp), 0)
    # cumsum of an all-ones mask along H == global row index + 1
    y_embed = (row + hi * th + 1).astype(jnp.float32)

    arg = y_embed * ycoef_ref[...] + xconst_ref[...]
    tile = jnp.where(sel_ref[...] > 0.5, jnp.sin(arg), jnp.cos(arg))

    o_ref[...] = jnp.broadcast_to(tile[None].astype(o_ref.dtype), (B, TH, WDp))


def _choose_h_tile(H, row_bytes, target_bytes=6 << 20):
    """Multiple-of-8 H tile whose (B, th, WDp) output block is ~target_bytes,
    with >= 2 tiles whenever H allows (so both v7x TensorCores get work)."""
    if H <= 8:
        return H
    th = max(8, (target_bytes // max(row_bytes, 1)) // 8 * 8)
    th = min(th, (H // 8) * 8)
    if -(-H // th) < 2:  # ensure at least 2 grid steps for the parallel axis
        th = max(8, ((-(-H // 2) + 7) // 8) * 8)
        th = min(th, (H // 8) * 8)
    return th


def position_embedding_sine(x, temperature=10000.0, normalize=False, scale=None,
                            eps=1e-5, out_dtype=jnp.float32):
    """Pallas equivalent of PositionEmbeddingSine.forward.  x: (B, H, W, D)."""
    if scale is not None and normalize is False:
        raise ValueError("normalize should be True if scale is passed")
    if scale is None:
        scale = 2.0 * math.pi

    B, H, W, D = x.shape
    P = D // 2                      # torch: num_pos_feats = num_feats // 2
    Dout = 2 * P                    # output feature dim (== D for even D)
    WD = W * Dout

    # ---- host-side precompute (float64 -> f32) of per-lane coefficient rows ----
    d = np.arange(Dout)
    jj = np.where(d < P, d, d - P)                        # index within each half
    expo = 2.0 * (jj // 2) / float(P)
    inv_dim_t = 1.0 / (float(temperature) ** expo)        # (Dout,), f64
    is_y = d < P
    sel_sin = (jj % 2 == 0).astype(np.float64)            # even lanes sin, odd cos

    y_scale = (scale / (float(H) + eps)) if normalize else 1.0
    x_embed = np.arange(1, W + 1, dtype=np.float64)       # cumsum of ones == idx + 1
    if normalize:
        x_embed = x_embed / (float(W) + eps) * scale

    # lane l = w*Dout + d :
    #   d <  P : arg = (h+1) * (y_scale * inv_dim_t[d])           (+ 0)
    #   d >= P : arg = 0                                   + x_embed[w]*inv_dim_t[d]
    ycoef_d = np.where(is_y, inv_dim_t * y_scale, 0.0)                       # (Dout,)
    ycoef = np.broadcast_to(ycoef_d, (W, Dout)).reshape(1, WD)
    xconst = np.where(is_y[None, :], 0.0,
                      x_embed[:, None] * inv_dim_t[None, :]).reshape(1, WD)
    sel = np.broadcast_to(sel_sin, (W, Dout)).reshape(1, WD)

    # ---- lane-dense output: pad folded lane axis up to a multiple of 128 ----
    WDp = -(-WD // 128) * 128
    pad = WDp - WD
    if pad:
        ycoef = np.pad(ycoef, ((0, 0), (0, pad)))
        xconst = np.pad(xconst, ((0, 0), (0, pad)))
        sel = np.pad(sel, ((0, 0), (0, pad)), constant_values=1.0)
    ycoef = jnp.asarray(ycoef, jnp.float32)
    xconst = jnp.asarray(xconst, jnp.float32)
    sel = jnp.asarray(sel, jnp.float32)

    itemsize = jnp.dtype(out_dtype).itemsize
    th = _choose_h_tile(H, B * WDp * itemsize)
    num_tiles = -(-H // th)                     # cdiv; tail block handled by Pallas

    block_bytes = B * th * WDp * itemsize
    vmem_limit = int(min(max(2 * block_bytes + (2 << 20), 16 << 20), 64 << 20))

    cost = pl.CostEstimate(
        flops=3 * H * WDp,
        transcendentals=2 * H * WDp,
        bytes_accessed=B * H * WDp * itemsize + 3 * WDp * 4,
    )

    kernel = partial(_pos_embed_kernel, th=th)
    out = pl.pallas_call(
        kernel,
        out_shape=jax.ShapeDtypeStruct((B, H, WDp), out_dtype),
        grid=(num_tiles,),
        in_specs=[
            pl.BlockSpec((1, WDp), lambda hi: (0, 0)),
            pl.BlockSpec((1, WDp), lambda hi: (0, 0)),
            pl.BlockSpec((1, WDp), lambda hi: (0, 0)),
        ],
        out_specs=pl.BlockSpec((B, th, WDp), lambda hi: (0, hi, 0)),
        compiler_params=pltpu.CompilerParams(
            dimension_semantics=("parallel",),
            vmem_limit_bytes=vmem_limit,
        ),
        cost_estimate=cost,
    )(ycoef, xconst, sel)

    if pad:
        out = out[:, :, :WD]
    # (B, H, W*Dout) -> (B, H, W, Dout): free row-major reshape.
    return out.reshape(B, H, W, Dout)


def _reference(x, temperature=10000.0, normalize=False, scale=None):
    """Pure-JAX reference mirroring the torch code, for verification."""
    if scale is None:
        scale = 2.0 * math.pi
    B, H, W, D = x.shape
    P = D // 2
    not_mask = jnp.ones((B, H, W), jnp.float32)
    y_embed = jnp.cumsum(not_mask, axis=1)
    x_embed = jnp.cumsum(not_mask, axis=2)
    if normalize:
        eps = 1e-5
        y_embed = y_embed / (y_embed[:, -1:, :] + eps) * scale
        x_embed = x_embed / (x_embed[:, :, -1:] + eps) * scale
    dim_t = jnp.arange(P, dtype=jnp.float32)
    dim_t = temperature ** (2.0 * (dim_t // 2) / P)
    pos_x = x_embed[..., None] / dim_t
    pos_y = y_embed[..., None] / dim_t
    pos_x = jnp.stack((jnp.sin(pos_x[..., 0::2]), jnp.cos(pos_x[..., 1::2])),
                      axis=4).reshape(B, H, W, P)
    pos_y = jnp.stack((jnp.sin(pos_y[..., 0::2]), jnp.cos(pos_y[..., 1::2])),
                      axis=4).reshape(B, H, W, P)
    return jnp.concatenate((pos_y, pos_x), axis=3)


if __name__ == "__main__":
    key = jax.random.PRNGKey(0)
    # x values are never read by the forward (only its shape); built anyway.
    B, H, W, D = 2, 8, 16, 64
    x = jax.random.normal(key, (B, H, W, D), dtype=jnp.float32)

    out = jax.block_until_ready(position_embedding_sine(x))
    ref = _reference(x)
    assert out.shape == ref.shape == (B, H, W, D)
    assert out.dtype == jnp.float32
    assert jnp.allclose(out, ref, atol=1e-4, rtol=1e-5)

    out_n = jax.block_until_ready(position_embedding_sine(x, normalize=True))
    ref_n = _reference(x, normalize=True)
    assert jnp.allclose(out_n, ref_n, atol=1e-4, rtol=1e-5)

    print("KERNEL_OK")
</pallas_src>

<mosaic_0001>
module attributes {stable_mosaic.version = 11 : i64} {
  func.func @_pos_embed_kernel(%arg0: i32, %arg1: memref<1x1024xf32, #tpu.memory_space<vmem>>, %arg2: memref<1x1024xf32, #tpu.memory_space<vmem>>, %arg3: memref<1x1024xf32, #tpu.memory_space<vmem>>, %arg4: memref<2x8x1024xf32, #tpu.memory_space<vmem>>) attributes {dimension_semantics = [#tpu.dimension_semantics<parallel>], iteration_bounds = array<i64: 1>, scalar_prefetch = 0 : i64, scratch_operands = 0 : i64, tpu.core_type = #tpu.core_type<tc>, window_params = [{pipeline_mode = #tpu.pipeline_mode<synchronous>, transform_indices = @transform_0, window_bounds = array<i64: 1, 1024>}, {pipeline_mode = #tpu.pipeline_mode<synchronous>, transform_indices = @transform_1, window_bounds = array<i64: 1, 1024>}, {pipeline_mode = #tpu.pipeline_mode<synchronous>, transform_indices = @transform_2, window_bounds = array<i64: 1, 1024>}, {transform_indices = @transform_3, window_bounds = array<i64: 2, 8, 1024>}]} {
    %0 = tpu.iota {dimensions = array<i32: 0>} : vector<8x1024xi32>
    %c8_i32 = arith.constant 8 : i32
    %1 = arith.muli %arg0, %c8_i32 : i32
    %2 = vector.broadcast %1 : i32 to vector<8x1024xi32>
    %3 = arith.addi %0, %2 : vector<8x1024xi32>
    %c1_i32 = arith.constant 1 : i32
    %4 = vector.broadcast %c1_i32 : i32 to vector<8x1024xi32>
    %5 = arith.addi %3, %4 : vector<8x1024xi32>
    %6 = arith.sitofp %5 : vector<8x1024xi32> to vector<8x1024xf32>
    %c0 = arith.constant 0 : index
    %c0_0 = arith.constant 0 : index
    %7 = vector.load %arg1[%c0, %c0_0] : memref<1x1024xf32, #tpu.memory_space<vmem>>, vector<1x1024xf32>
    %8 = vector.broadcast %7 : vector<1x1024xf32> to vector<8x1024xf32>
    %9 = arith.mulf %6, %8 : vector<8x1024xf32>
    %c0_1 = arith.constant 0 : index
    %c0_2 = arith.constant 0 : index
    %10 = vector.load %arg2[%c0_1, %c0_2] : memref<1x1024xf32, #tpu.memory_space<vmem>>, vector<1x1024xf32>
    %11 = vector.broadcast %10 : vector<1x1024xf32> to vector<8x1024xf32>
    %12 = arith.addf %9, %11 : vector<8x1024xf32>
    %c0_3 = arith.constant 0 : index
    %c0_4 = arith.constant 0 : index
    %13 = vector.load %arg3[%c0_3, %c0_4] : memref<1x1024xf32, #tpu.memory_space<vmem>>, vector<1x1024xf32>
    %cst = arith.constant 5.000000e-01 : f32
    %14 = vector.broadcast %cst : f32 to vector<1x1024xf32>
    %15 = arith.cmpf ogt, %13, %14 : vector<1x1024xf32>
    %16 = math.sin %12 : vector<8x1024xf32>
    %17 = math.cos %12 : vector<8x1024xf32>
    %18 = vector.shape_cast %15 : vector<1x1024xi1> to vector<1x1024xi1>
    %19 = vector.broadcast %18 : vector<1x1024xi1> to vector<8x1024xi1>
    %20 = arith.select %19, %16, %17 : vector<8x1024xi1>, vector<8x1024xf32>
    %21 = vector.shape_cast %20 : vector<8x1024xf32> to vector<1x8x1024xf32>
    %22 = vector.shape_cast %21 : vector<1x8x1024xf32> to vector<1x8x1024xf32>
    %23 = vector.broadcast %22 : vector<1x8x1024xf32> to vector<2x8x1024xf32>
    %c0_5 = arith.constant 0 : index
    %c0_6 = arith.constant 0 : index
    %c0_7 = arith.constant 0 : index
    %24 = vector.load %arg4[%c0_5, %c0_6, %c0_7] : memref<2x8x1024xf32, #tpu.memory_space<vmem>>, vector<2x8x1024xf32>
    tpu.vector_store %arg4[%c0_5, %c0_6, %c0_7], %23 {strides = array<i32>} : memref<2x8x1024xf32, #tpu.memory_space<vmem>>, vector<2x8x1024xf32>,
    return
  }
  func.func @transform_0(%arg0: i32) -> (i32, i32) {
    %c0_i32 = arith.constant 0 : i32
    %c0_i32_0 = arith.constant 0 : i32
    %c0_i32_1 = arith.constant 0 : i32
    return %c0_i32, %c0_i32_0 : i32, i32
  }
  func.func @transform_1(%arg0: i32) -> (i32, i32) {
    %c0_i32 = arith.constant 0 : i32
    %c0_i32_0 = arith.constant 0 : i32
    %c0_i32_1 = arith.constant 0 : i32
    return %c0_i32, %c0_i32_0 : i32, i32
  }
  func.func @transform_2(%arg0: i32) -> (i32, i32) {
    %c0_i32 = arith.constant 0 : i32
    %c0_i32_0 = arith.constant 0 : i32
    %c0_i32_1 = arith.constant 0 : i32
    return %c0_i32, %c0_i32_0 : i32, i32
  }
  func.func @transform_3(%arg0: i32) -> (i32, i32, i32) {
    %c0_i32 = arith.constant 0 : i32
    %c0_i32_0 = arith.constant 0 : i32
    %c0_i32_1 = arith.constant 0 : i32
    return %c0_i32, %arg0, %c0_i32_0 : i32, i32, i32
  }
}

</mosaic_0001>

<llo_original>
// kernel: tpu_custom_call.1
$region0: #{tpu_custom_call.1}
  #allocation0 [shape = 'u32[]', space=smem, size = 0x4, offset = 0x4, fixed_abs, tag = 'smem constant byte address 0x4 - core index']
  #allocation1 [shape = 'u32[144,128]{1,0:T(1,128)}', space=vmem, size = 0x12000, scoped, tag = 'internal scratch']
  %s0 = inlined_call_operand.hbm [shape: f32[1,1024], index: 0, kind: input, shape index: {}]
  %s1 = inlined_call_operand.hbm [shape: f32[1,1024], index: 1, kind: input, shape index: {}]
  %s2 = inlined_call_operand.hbm [shape: f32[1,1024], index: 2, kind: input, shape index: {}]
  %s3 = inlined_call_operand.hbm [shape: f32[2,8,1024], index: 3, kind: output, shape index: {}]
  %s4 = sld [smem:[#allocation0]]
  $region34: #{tpu_custom_call.1} parent=0
    _
  %s6 = ssub.s32 1, %s4
  %s7 = scalar_select 0, %s6, %s4
  $region1: #{tpu_custom_call.1} parent=0
    #allocation2 [shape = 'u8[4096]{0}', space=vmem, size = 0x1000, scoped, tag = 'input window, operand 0, single buffered']
    #allocation3 [shape = 's32[1]{0}', space=sflag, size = 0x4, scoped, tag = 'scoped memory for tpu_custom_call.1']
    #allocation4 [shape = 's32[1]{0}', space=sflag, size = 0x4, scoped, tag = 'scoped memory for tpu_custom_call.1']
    #allocation5 [shape = 'u8[4096]{0}', space=vmem, size = 0x1000, scoped, tag = 'input window, operand 1, single buffered']
    #allocation6 [shape = 's32[1]{0}', space=sflag, size = 0x4, scoped, tag = 'scoped memory for tpu_custom_call.1']
    #allocation7 [shape = 'u8[4096]{0}', space=vmem, size = 0x1000, scoped, tag = 'input window, operand 2, single buffered']
    #allocation8 [shape = 'u8[65536]{0}', space=vmem, size = 0x10000, scoped, tag = 'output window, operand 0, single buffered']
    %8 = vsyncpa [#allocation3], 0
    %9 = vsyncpa [#allocation6], 0
    %10 = vsyncpa [#allocation4], 0
    // Predicated region
    $region2: #{tpu_custom_call.1} parent=1 // pred_check
      _
    $region3: #{tpu_custom_call.1} parent=1 // pred_check_branch
      %12 = sbr.rel (0) target = $region5
    $region4: #{tpu_custom_call.1} parent=1 // pred_region
      %s14 = ssub.s32 128, 128
      %15 = vsyncadd [#allocation3], %s14
      %s17 = sshll.u32 [#allocation2], 4
      %s18 = int_to_ptr.vmem [resolvable:$true] %s17
      %20 = dma.hbm_to_vmem [thread:$0]  %s0, 128, %s18, [#allocation3]
    $region5: #{tpu_custom_call.1} parent=1 // pred_fallthru
      _
    // Predicated region
    $region6: #{tpu_custom_call.1} parent=1 // pred_check
      _
    $region7: #{tpu_custom_call.1} parent=1 // pred_check_branch
      %22 = sbr.rel (0) target = $region9
    $region8: #{tpu_custom_call.1} parent=1 // pred_region
      %s24 = ssub.s32 128, 128
      %25 = vsyncadd [#allocation6], %s24
      %s27 = sshll.u32 [#allocation5], 4
      %s28 = int_to_ptr.vmem [resolvable:$true] %s27
      %30 = dma.hbm_to_vmem [thread:$0]  %s1, 128, %s28, [#allocation6]
    $region9: #{tpu_custom_call.1} parent=1 // pred_fallthru
      _
    // Predicated region
    $region10: #{tpu_custom_call.1} parent=1 // pred_check
      _
    $region11: #{tpu_custom_call.1} parent=1 // pred_check_branch
      %32 = sbr.rel (0) target = $region13
    $region12: #{tpu_custom_call.1} parent=1 // pred_region
      %s34 = ssub.s32 128, 128
      %35 = vsyncadd [#allocation6], %s34
      %s37 = sshll.u32 [#allocation7], 4
      %s38 = int_to_ptr.vmem [resolvable:$true] %s37
      %40 = dma.hbm_to_vmem [thread:$0]  %s2, 128, %s38, [#allocation6]
    $region13: #{tpu_custom_call.1} parent=1 // pred_fallthru
      _
    // Predicated region
    $region14: #{tpu_custom_call.1} parent=1 // pred_check
      _
    $region15: #{tpu_custom_call.1} parent=1 // pred_check_branch
      %42 = sbr.rel (0) target = $region17
    $region16: #{tpu_custom_call.1} parent=1 // pred_region
      %43 = dma.done [#allocation3], 128
    $region17: #{tpu_custom_call.1} parent=1 // pred_fallthru
      _
    // Predicated region
    $region18: #{tpu_custom_call.1} parent=1 // pred_check
      _
    $region19: #{tpu_custom_call.1} parent=1 // pred_check_branch
      %45 = sbr.rel (0) target = $region21
    $region20: #{tpu_custom_call.1} parent=1 // pred_region
      %46 = dma.done [#allocation6], 128
    $region21: #{tpu_custom_call.1} parent=1 // pred_fallthru
      _
    // Predicated region
    $region22: #{tpu_custom_call.1} parent=1 // pred_check
      _
    $region23: #{tpu_custom_call.1} parent=1 // pred_check_branch
      %48 = sbr.rel (0) target = $region25
    $region24: #{tpu_custom_call.1} parent=1 // pred_region
      %49 = dma.done [#allocation6], 128
    $region25: #{tpu_custom_call.1} parent=1 // pred_fallthru
      _
    %v50 = vlaneseq
    %v51 = vshrl.u32 %v50, 7
    %s52 = smul.u32 0, 8
    %v53 = vstv %s52
    %v54 = vadd.s32 %v51, %v53
    %v55 = vadd.s32 %v54, 1
    %v56 = vcvt.s32.f32 %v55
    %v57 = vld [vmem:[#allocation2] sm:$0xff]
    %v59 = vlaneseq
    %v60 = vshrl.u32 %v59, 7
    %v61 = vsub.s32 0, %v60
    %v62 = vrot.slane %v57, %v61
    %v63 = vlaneseq
    %v64 = vshrl.u32 %v63, 7
    %v65 = vsub.s32 1, %v64
    %v66 = vrot.slane %v57, %v65
    %v67 = vlaneseq
    %v68 = vshrl.u32 %v67, 7
    %v69 = vsub.s32 2, %v68
    %v70 = vrot.slane %v57, %v69
    %v71 = vlaneseq
    %v72 = vshrl.u32 %v71, 7
    %v73 = vsub.s32 3, %v72
    %v74 = vrot.slane %v57, %v73
    %v75 = vlaneseq
    %v76 = vshrl.u32 %v75, 7
    %v77 = vsub.s32 4, %v76
    %v78 = vrot.slane %v57, %v77
    %v79 = vlaneseq
    %v80 = vshrl.u32 %v79, 7
    %v81 = vsub.s32 5, %v80
    %v82 = vrot.slane %v57, %v81
    %v83 = vlaneseq
    %v84 = vshrl.u32 %v83, 7
    %v85 = vsub.s32 6, %v84
    %v86 = vrot.slane %v57, %v85
    %v87 = vlaneseq
    %v88 = vshrl.u32 %v87, 7
    %v89 = vsub.s32 7, %v88
    %v90 = vrot.slane %v57, %v89
    %v99 = vmul.f32 %v56, %v62
    %v100 = vmul.f32 %v56, %v66
    %v101 = vmul.f32 %v56, %v70
    %v102 = vmul.f32 %v56, %v74
    %v103 = vmul.f32 %v56, %v78
    %v104 = vmul.f32 %v56, %v82
    %v105 = vmul.f32 %v56, %v86
    %v106 = vmul.f32 %v56, %v90
    %v107 = vld [vmem:[#allocation5] sm:$0xff]
    %v109 = vlaneseq
    %v110 = vshrl.u32 %v109, 7
    %v111 = vsub.s32 0, %v110
    %v112 = vrot.slane %v107, %v111
    %v113 = vlaneseq
    %v114 = vshrl.u32 %v113, 7
    %v115 = vsub.s32 1, %v114
    %v116 = vrot.slane %v107, %v115
    %v117 = vlaneseq
    %v118 = vshrl.u32 %v117, 7
    %v119 = vsub.s32 2, %v118
    %v120 = vrot.slane %v107, %v119
    %v121 = vlaneseq
    %v122 = vshrl.u32 %v121, 7
    %v123 = vsub.s32 3, %v122
    %v124 = vrot.slane %v107, %v123
    %v125 = vlaneseq
    %v126 = vshrl.u32 %v125, 7
    %v127 = vsub.s32 4, %v126
    %v128 = vrot.slane %v107, %v127
    %v129 = vlaneseq
    %v130 = vshrl.u32 %v129, 7
    %v131 = vsub.s32 5, %v130
    %v132 = vrot.slane %v107, %v131
    %v133 = vlaneseq
    %v134 = vshrl.u32 %v133, 7
    %v135 = vsub.s32 6, %v134
    %v136 = vrot.slane %v107, %v135
    %v137 = vlaneseq
    %v138 = vshrl.u32 %v137, 7
    %v139 = vsub.s32 7, %v138
    %v140 = vrot.slane %v107, %v139
    %v149 = vadd.f32 %v99, %v112
    %v150 = vadd.f32 %v100, %v116
    %v151 = vadd.f32 %v101, %v120
    %v152 = vadd.f32 %v102, %v124
    %v153 = vadd.f32 %v103, %v128
    %v154 = vadd.f32 %v104, %v132
    %v155 = vadd.f32 %v105, %v136
    %v156 = vadd.f32 %v106, %v140
    %v157 = vld [vmem:[#allocation7] sm:$0xff]
    %vm158 = vcmp.gt.f32.partialorder %v157, 0.5
    %v159 = vand.u32 2147483647, %v149
    %vm160 = vcmp.le.f32.partialorder %v159, 0.7853982
    %vm161 = vcmp.lt.s32.totalorder %v149, 0
    %v162 = vand.u32 %v149, 2139095040
    %v163 = vshrl.u32 %v162, 23
    %v164 = vsub.s32 %v163, 127
    %v165 = vand.u32 2147483647, %v149
    %v166 = vand.u32 %v165, 8388607
    %v167 = vor.u32 %v166, 8388608
    %v168 = vsub.s32 0, %v167
    %v169 = vadd.s32 %v164, 1
    %vm170 = vcmp.gt.s32.totalorder %v169, 0
    %v171 = vsel %vm170, %v169, 0
    %v172 = vshrl.u32 %v171, 5
    %v173 = vand.u32 %v171, 31
    %v174 = vsub.s32 32, %v173
    %v175 = vshrl.u32 683565275, %v174
    %v176 = vshll.u32 683565275, %v173
    %v177 = vshrl.u32 2475754826, %v174
    %v178 = vor.u32 %v176, %v177
    %v179 = vshll.u32 2475754826, %v173
    %v180 = vshrl.u32 2131351028, %v174
    %v181 = vor.u32 %v179, %v180
    %v182 = vshll.u32 2131351028, %v173
    %v183 = vshrl.u32 2102212464, %v174
    %v184 = vor.u32 %v182, %v183
    %v185 = vshll.u32 2102212464, %v173
    %v186 = vshrl.u32 920167782, %v174
    %v187 = vor.u32 %v185, %v186
    %v188 = vshll.u32 920167782, %v173
    %v189 = vshrl.u32 1326507024, %v174
    %v190 = vor.u32 %v188, %v189
    %vm191 = vcmp.lt.s32.totalorder %v172, 1
    %vm192 = vcmp.lt.s32.totalorder %v172, 2
    %vm193 = vcmp.lt.s32.totalorder %v172, 3
    %vm194 = vcmp.lt.s32.totalorder %v172, 4
    %v195 = vsel %vm191, %v175, %v178
    %v196 = vsel %vm194, %v184, 2102212464
    %v197 = vsel %vm193, %v181, %v196
    %v198 = vsel %vm192, %v195, %v197
    %v199 = vsel %vm191, %v178, %v181
    %v200 = vsel %vm194, %v187, 920167782
    %v201 = vsel %vm193, %v184, %v200
    %v202 = vsel %vm192, %v199, %v201
    %v203 = vsel %vm191, %v181, %v184
    %v204 = vsel %vm194, %v190, 1326507024
    %v205 = vsel %vm193, %v187, %v204
    %v206 = vsel %vm192, %v203, %v205
    %v207 = vshll.u32 %v167, 8
    %v208 = vmul.u32.u64.compose %v207, %v206
    %v209 = vextract.low.u32 %v208
    %v210 = vextract.high.u32 %v208
    %v211 = vmul.u32.u64.compose %v207, %v202
    %v212 = vextract.low.u32 %v211
    %v213 = vextract.high.u32 %v211
    %v214 = vmul.u32 %v207, %v198
    %v215 = vadd.s32 %v210, %v212
    %vm216 = vc.u32 %v210, %v212
    %v217 = vadd.s32 %v213, 1
    %v218 = vsel %vm216, %v217, %v213
    %v219 = vadd.s32 %v214, %v218
    %v220 = vadd.s32 %v219, 536870912
    %v221 = vshrl.u32 %v220, 30
    %v222 = vshll.u32 %v221, 30
    %v223 = vsub.s32 %v219, %v222
    %vm224 = vcmp.lt.s32.totalorder %v223, 0
    %v225 = vsub.s32 0, %v223
    %v226 = vsel %vm224, %v225, %v223
    %v227 = vclz %v226
    %v228 = vsub.s32 %v227, 2
    %vm229 = vcmp.gt.s32.totalorder 0, %v228
    %v230 = vsel %vm229, 0, %v228
    %v231 = vsub.s32 32, %v230
    %v232 = vshll.u32 %v223, %v230
    %v233 = vshrl.u32 %v215, %v231
    %v234 = vor.u32 %v232, %v233
    %v235 = vsub.s32 4294967266, %v230
    %v236 = vadd.s32 %v235, 127
    %v237 = vshll.u32 %v236, 23
    %v238 = vor.u32 4788187, %v237
    %v239 = vand.u32 2147483647, %v238
    %v241 = vcvt.s32.f32 %v234
    %v242 = vmul.f32 %v241, %v239
    %v243 = vxor.u32 %v242, 2147483648
    %v244 = vsel %vm161, %v243, %v242
    %v245 = vsub.s32 4, %v221
    %v246 = vsel %vm161, %v245, %v221
    %v247 = vsel %vm160, %v149, %v244
    %v248 = vsel %vm160, 0, %v246
    %v249 = vcosq.f32.pop %v247
    %v250 = vsinq.f32.pop %v247
    %vm251 = vweird.f32 %v149
    %v252 = vadd.s32 %v248, 3
    %v253 = vand.u32 %v252, 3
    %vm254 = vcmp.lt.s32.totalorder %v253, 2
    %vm255 = vcmp.eq.s32.totalorder %v253, 0
    %v256 = vxor.u32 %v250, 2147483648
    %v257 = vsel %vm255, %v249, %v256
    %vm258 = vcmp.eq.s32.totalorder %v253, 2
    %v259 = vxor.u32 %v249, 2147483648
    %v260 = vsel %vm258, %v259, %v250
    %v261 = vsel %vm254, %v257, %v260
    %v262 = vsel %vm251, nan, %v261
    %v263 = vand.u32 2147483647, %v150
    %vm264 = vcmp.le.f32.partialorder %v263, 0.7853982
    %vm265 = vcmp.lt.s32.totalorder %v150, 0
    %v266 = vand.u32 %v150, 2139095040
    %v267 = vshrl.u32 %v266, 23
    %v268 = vsub.s32 %v267, 127
    %v269 = vand.u32 2147483647, %v150
    %v270 = vand.u32 %v269, 8388607
    %v271 = vor.u32 %v270, 8388608
    %v272 = vsub.s32 0, %v271
    %v273 = vadd.s32 %v268, 1
    %vm274 = vcmp.gt.s32.totalorder %v273, 0
    %v275 = vsel %vm274, %v273, 0
    %v276 = vshrl.u32 %v275, 5
    %v277 = vand.u32 %v275, 31
    %v278 = vsub.s32 32, %v277
    %v279 = vshrl.u32 683565275, %v278
    %v280 = vshll.u32 683565275, %v277
    %v281 = vshrl.u32 2475754826, %v278
    %v282 = vor.u32 %v280, %v281
    %v283 = vshll.u32 2475754826, %v277
    %v284 = vshrl.u32 2131351028, %v278
    %v285 = vor.u32 %v283, %v284
    %v286 = vshll.u32 2131351028, %v277
    %v287 = vshrl.u32 2102212464, %v278
    %v288 = vor.u32 %v286, %v287
    %v289 = vshll.u32 2102212464, %v277
    %v290 = vshrl.u32 920167782, %v278
    %v291 = vor.u32 %v289, %v290
    %v292 = vshll.u32 920167782, %v277
    %v293 = vshrl.u32 1326507024, %v278
    %v294 = vor.u32 %v292, %v293
    %vm295 = vcmp.lt.s32.totalorder %v276, 1
    %vm296 = vcmp.lt.s32.totalorder %v276, 2
    %vm297 = vcmp.lt.s32.totalorder %v276, 3
    %vm298 = vcmp.lt.s32.totalorder %v276, 4
    %v299 = vsel %vm295, %v279, %v282
    %v300 = vsel %vm298, %v288, 2102212464
    %v301 = vsel %vm297, %v285, %v300
    %v302 = vsel %vm296, %v299, %v301
    %v303 = vsel %vm295, %v282, %v285
    %v304 = vsel %vm298, %v291, 920167782
    %v305 = vsel %vm297, %v288, %v304
    %v306 = vsel %vm296, %v303, %v305
    %v307 = vsel %vm295, %v285, %v288
    %v308 = vsel %vm298, %v294, 1326507024
    %v309 = vsel %vm297, %v291, %v308
    %v310 = vsel %vm296, %v307, %v309
    %v311 = vshll.u32 %v271, 8
    %v312 = vmul.u32.u64.compose %v311, %v310
    %v313 = vextract.low.u32 %v312
    %v314 = vextract.high.u32 %v312
    %v315 = vmul.u32.u64.compose %v311, %v306
    %v316 = vextract.low.u32 %v315
    %v317 = vextract.high.u32 %v315
    %v318 = vmul.u32 %v311, %v302
    %v319 = vadd.s32 %v314, %v316
    %vm320 = vc.u32 %v314, %v316
    %v321 = vadd.s32 %v317, 1
    %v322 = vsel %vm320, %v321, %v317
    %v323 = vadd.s32 %v318, %v322
    %v324 = vadd.s32 %v323, 536870912
    %v325 = vshrl.u32 %v324, 30
    %v326 = vshll.u32 %v325, 30
    %v327 = vsub.s32 %v323, %v326
    %vm328 = vcmp.lt.s32.totalorder %v327, 0
    %v329 = vsub.s32 0, %v327
    %v330 = vsel %vm328, %v329, %v327
    %v331 = vclz %v330
    %v332 = vsub.s32 %v331, 2
    %vm333 = vcmp.gt.s32.totalorder 0, %v332
    %v334 = vsel %vm333, 0, %v332
    %v335 = vsub.s32 32, %v334
    %v336 = vshll.u32 %v327, %v334
    %v337 = vshrl.u32 %v319, %v335
    %v338 = vor.u32 %v336, %v337
    %v339 = vsub.s32 4294967266, %v334
    %v340 = vadd.s32 %v339, 127
    %v341 = vshll.u32 %v340, 23
    %v342 = vor.u32 4788187, %v341
    %v343 = vand.u32 2147483647, %v342
    %v345 = vcvt.s32.f32 %v338
    %v346 = vmul.f32 %v345, %v343
    %v347 = vxor.u32 %v346, 2147483648
    %v348 = vsel %vm265, %v347, %v346
    %v349 = vsub.s32 4, %v325
    %v350 = vsel %vm265, %v349, %v325
    %v351 = vsel %vm264, %v150, %v348
    %v352 = vsel %vm264, 0, %v350
    %v353 = vcosq.f32.pop %v351
    %v354 = vsinq.f32.pop %v351
    %vm355 = vweird.f32 %v150
    %v356 = vadd.s32 %v352, 3
    %v357 = vand.u32 %v356, 3
    %vm358 = vcmp.lt.s32.totalorder %v357, 2
    %vm359 = vcmp.eq.s32.totalorder %v357, 0
    %v360 = vxor.u32 %v354, 2147483648
    %v361 = vsel %vm359, %v353, %v360
    %vm362 = vcmp.eq.s32.totalorder %v357, 2
    %v363 = vxor.u32 %v353, 2147483648
    %v364 = vsel %vm362, %v363, %v354
    %v365 = vsel %vm358, %v361, %v364
    %v366 = vsel %vm355, nan, %v365
    %v367 = vand.u32 2147483647, %v151
    %vm368 = vcmp.le.f32.partialorder %v367, 0.7853982
    %vm369 = vcmp.lt.s32.totalorder %v151, 0
    %v370 = vand.u32 %v151, 2139095040
    %v371 = vshrl.u32 %v370, 23
    %v372 = vsub.s32 %v371, 127
    %v373 = vand.u32 2147483647, %v151
    %v374 = vand.u32 %v373, 8388607
    %v375 = vor.u32 %v374, 8388608
    %v376 = vsub.s32 0, %v375
    %v377 = vadd.s32 %v372, 1
    %vm378 = vcmp.gt.s32.totalorder %v377, 0
    %v379 = vsel %vm378, %v377, 0
    %v380 = vshrl.u32 %v379, 5
    %v381 = vand.u32 %v379, 31
    %v382 = vsub.s32 32, %v381
    %v383 = vshrl.u32 683565275, %v382
    %v384 = vshll.u32 683565275, %v381
    %v385 = vshrl.u32 2475754826, %v382
    %v386 = vor.u32 %v384, %v385
    %v387 = vshll.u32 2475754826, %v381
    %v388 = vshrl.u32 2131351028, %v382
    %v389 = vor.u32 %v387, %v388
    %v390 = vshll.u32 2131351028, %v381
    %v391 = vshrl.u32 2102212464, %v382
    %v392 = vor.u32 %v390, %v391
    %v393 = vshll.u32 2102212464, %v381
    %v394 = vshrl.u32 920167782, %v382
    %v395 = vor.u32 %v393, %v394
    %v396 = vshll.u32 920167782, %v381
    %v397 = vshrl.u32 1326507024, %v382
    %v398 = vor.u32 %v396, %v397
    %vm399 = vcmp.lt.s32.totalorder %v380, 1
    %vm400 = vcmp.lt.s32.totalorder %v380, 2
    %vm401 = vcmp.lt.s32.totalorder %v380, 3
    %vm402 = vcmp.lt.s32.totalorder %v380, 4
    %v403 = vsel %vm399, %v383, %v386
    %v404 = vsel %vm402, %v392, 2102212464
    %v405 = vsel %vm401, %v389, %v404
    %v406 = vsel %vm400, %v403, %v405
    %v407 = vsel %vm399, %v386, %v389
    %v408 = vsel %vm402, %v395, 920167782
    %v409 = vsel %vm401, %v392, %v408
    %v410 = vsel %vm400, %v407, %v409
    %v411 = vsel %vm399, %v389, %v392
    %v412 = vsel %vm402, %v398, 1326507024
    %v413 = vsel %vm401, %v395, %v412
    %v414 = vsel %vm400, %v411, %v413
    %v415 = vshll.u32 %v375, 8
    %v416 = vmul.u32.u64.compose %v415, %v414
    %v417 = vextract.low.u32 %v416
    %v418 = vextract.high.u32 %v416
    %v419 = vmul.u32.u64.compose %v415, %v410
    %v420 = vextract.low.u32 %v419
    %v421 = vextract.high.u32 %v419
    %v422 = vmul.u32 %v415, %v406
    %v423 = vadd.s32 %v418, %v420
    %vm424 = vc.u32 %v418, %v420
    %v425 = vadd.s32 %v421, 1
    %v426 = vsel %vm424, %v425, %v421
    %v427 = vadd.s32 %v422, %v426
    %v428 = vadd.s32 %v427, 536870912
    %v429 = vshrl.u32 %v428, 30
    %v430 = vshll.u32 %v429, 30
    %v431 = vsub.s32 %v427, %v430
    %vm432 = vcmp.lt.s32.totalorder %v431, 0
    %v433 = vsub.s32 0, %v431
    %v434 = vsel %vm432, %v433, %v431
    %v435 = vclz %v434
    %v436 = vsub.s32 %v435, 2
    %vm437 = vcmp.gt.s32.totalorder 0, %v436
    %v438 = vsel %vm437, 0, %v436
    %v439 = vsub.s32 32, %v438
    %v440 = vshll.u32 %v431, %v438
    %v441 = vshrl.u32 %v423, %v439
    %v442 = vor.u32 %v440, %v441
    %v443 = vsub.s32 4294967266, %v438
    %v444 = vadd.s32 %v443, 127
    %v445 = vshll.u32 %v444, 23
    %v446 = vor.u32 4788187, %v445
    %v447 = vand.u32 2147483647, %v446
    %v449 = vcvt.s32.f32 %v442
    %v450 = vmul.f32 %v449, %v447
    %v451 = vxor.u32 %v450, 2147483648
    %v452 = vsel %vm369, %v451, %v450
    %v453 = vsub.s32 4, %v429
    %v454 = vsel %vm369, %v453, %v429
    %v455 = vsel %vm368, %v151, %v452
    %v456 = vsel %vm368, 0, %v454
    %v457 = vcosq.f32.pop %v455
    %v458 = vsinq.f32.pop %v455
    %vm459 = vweird.f32 %v151
    %v460 = vadd.s32 %v456, 3
    %v461 = vand.u32 %v460, 3
    %vm462 = vcmp.lt.s32.totalorder %v461, 2
    %vm463 = vcmp.eq.s32.totalorder %v461, 0
    %v464 = vxor.u32 %v458, 2147483648
    %v465 = vsel %vm463, %v457, %v464
    %vm466 = vcmp.eq.s32.totalorder %v461, 2
    %v467 = vxor.u32 %v457, 2147483648
    %v468 = vsel %vm466, %v467, %v458
    %v469 = vsel %vm462, %v465, %v468
    %v470 = vsel %vm459, nan, %v469
    %v471 = vand.u32 2147483647, %v152
    %vm472 = vcmp.le.f32.partialorder %v471, 0.7853982
    %vm473 = vcmp.lt.s32.totalorder %v152, 0
    %v474 = vand.u32 %v152, 2139095040
    %v475 = vshrl.u32 %v474, 23
    %v476 = vsub.s32 %v475, 127
    %v477 = vand.u32 2147483647, %v152
    %v478 = vand.u32 %v477, 8388607
    %v479 = vor.u32 %v478, 8388608
    %v480 = vsub.s32 0, %v479
    %v481 = vadd.s32 %v476, 1
    %vm482 = vcmp.gt.s32.totalorder %v481, 0
    %v483 = vsel %vm482, %v481, 0
    %v484 = vshrl.u32 %v483, 5
    %v485 = vand.u32 %v483, 31
    %v486 = vsub.s32 32, %v485
    %v487 = vshrl.u32 683565275, %v486
    %v488 = vshll.u32 683565275, %v485
    %v489 = vshrl.u32 2475754826, %v486
    %v490 = vor.u32 %v488, %v489
    %v491 = vshll.u32 2475754826, %v485
    %v492 = vshrl.u32 2131351028, %v486
    %v493 = vor.u32 %v491, %v492
    %v494 = vshll.u32 2131351028, %v485
    %v495 = vshrl.u32 2102212464, %v486
    %v496 = vor.u32 %v494, %v495
    %v497 = vshll.u32 2102212464, %v485
    %v498 = vshrl.u32 920167782, %v486
    %v499 = vor.u32 %v497, %v498
    %v500 = vshll.u32 920167782, %v485
    %v501 = vshrl.u32 1326507024, %v486
    %v502 = vor.u32 %v500, %v501
    %vm503 = vcmp.lt.s32.totalorder %v484, 1
    %vm504 = vcmp.lt.s32.totalorder %v484, 2
    %vm505 = vcmp.lt.s32.totalorder %v484, 3
    %vm506 = vcmp.lt.s32.totalorder %v484, 4
    %v507 = vsel %vm503, %v487, %v490
    %v508 = vsel %vm506, %v496, 2102212464
    %v509 = vsel %vm505, %v493, %v508
    %v510 = vsel %vm504, %v507, %v509
    %v511 = vsel %vm503, %v490, %v493
    %v512 = vsel %vm506, %v499, 920167782
    %v513 = vsel %vm505, %v496, %v512
    %v514 = vsel %vm504, %v511, %v513
    %v515 = vsel %vm503, %v493, %v496
    %v516 = vsel %vm506, %v502, 1326507024
    %v517 = vsel %vm505, %v499, %v516
    %v518 = vsel %vm504, %v515, %v517
    %v519 = vshll.u32 %v479, 8
    %v520 = vmul.u32.u64.compose %v519, %v518
    %v521 = vextract.low.u32 %v520
    %v522 = vextract.high.u32 %v520
    %v523 = vmul.u32.u64.compose %v519, %v514
    %v524 = vextract.low.u32 %v523
    %v525 = vextract.high.u32 %v523
    %v526 = vmul.u32 %v519, %v510
    %v527 = vadd.s32 %v522, %v524
    %vm528 = vc.u32 %v522, %v524
    %v529 = vadd.s32 %v525, 1
    %v530 = vsel %vm528, %v529, %v525
    %v531 = vadd.s32 %v526, %v530
    %v532 = vadd.s32 %v531, 536870912
    %v533 = vshrl.u32 %v532, 30
    %v534 = vshll.u32 %v533, 30
    %v535 = vsub.s32 %v531, %v534
    %vm536 = vcmp.lt.s32.totalorder %v535, 0
    %v537 = vsub.s32 0, %v535
    %v538 = vsel %vm536, %v537, %v535
    %v539 = vclz %v538
    %v540 = vsub.s32 %v539, 2
    %vm541 = vcmp.gt.s32.totalorder 0, %v540
    %v542 = vsel %vm541, 0, %v540
    %v543 = vsub.s32 32, %v542
    %v544 = vshll.u32 %v535, %v542
    %v545 = vshrl.u32 %v527, %v543
    %v546 = vor.u32 %v544, %v545
    %v547 = vsub.s32 4294967266, %v542
    %v548 = vadd.s32 %v547, 127
    %v549 = vshll.u32 %v548, 23
    %v550 = vor.u32 4788187, %v549
    %v551 = vand.u32 2147483647, %v550
    %v553 = vcvt.s32.f32 %v546
    %v554 = vmul.f32 %v553, %v551
    %v555 = vxor.u32 %v554, 2147483648
    %v556 = vsel %vm473, %v555, %v554
    %v557 = vsub.s32 4, %v533
    %v558 = vsel %vm473, %v557, %v533
    %v559 = vsel %vm472, %v152, %v556
    %v560 = vsel %vm472, 0, %v558
    %v561 = vcosq.f32.pop %v559
    %v562 = vsinq.f32.pop %v559
    %vm563 = vweird.f32 %v152
    %v564 = vadd.s32 %v560, 3
    %v565 = vand.u32 %v564, 3
    %vm566 = vcmp.lt.s32.totalorder %v565, 2
    %vm567 = vcmp.eq.s32.totalorder %v565, 0
    %v568 = vxor.u32 %v562, 2147483648
    %v569 = vsel %vm567, %v561, %v568
    %vm570 = vcmp.eq.s32.totalorder %v565, 2
    %v571 = vxor.u32 %v561, 2147483648
    %v572 = vsel %vm570, %v571, %v562
    %v573 = vsel %vm566, %v569, %v572
    %v574 = vsel %vm563, nan, %v573
    %v575 = vand.u32 2147483647, %v153
    %vm576 = vcmp.le.f32.partialorder %v575, 0.7853982
    %vm577 = vcmp.lt.s32.totalorder %v153, 0
    %v578 = vand.u32 %v153, 2139095040
    %v579 = vshrl.u32 %v578, 23
    %v580 = vsub.s32 %v579, 127
    %v581 = vand.u32 2147483647, %v153
    %v582 = vand.u32 %v581, 8388607
    %v583 = vor.u32 %v582, 8388608
    %v584 = vsub.s32 0, %v583
    %v585 = vadd.s32 %v580, 1
    %vm586 = vcmp.gt.s32.totalorder %v585, 0
    %v587 = vsel %vm586, %v585, 0
    %v588 = vshrl.u32 %v587, 5
    %v589 = vand.u32 %v587, 31
    %v590 = vsub.s32 32, %v589
    %v591 = vshrl.u32 683565275, %v590
    %v592 = vshll.u32 683565275, %v589
    %v593 = vshrl.u32 2475754826, %v590
    %v594 = vor.u32 %v592, %v593
    %v595 = vshll.u32 2475754826, %v589
    %v596 = vshrl.u32 2131351028, %v590
    %v597 = vor.u32 %v595, %v596
    %v598 = vshll.u32 2131351028, %v589
    %v599 = vshrl.u32 2102212464, %v590
    %v600 = vor.u32 %v598, %v599
    %v601 = vshll.u32 2102212464, %v589
    %v602 = vshrl.u32 920167782, %v590
    %v603 = vor.u32 %v601, %v602
    %v604 = vshll.u32 920167782, %v589
    %v605 = vshrl.u32 1326507024, %v590
    %v606 = vor.u32 %v604, %v605
    %vm607 = vcmp.lt.s32.totalorder %v588, 1
    %vm608 = vcmp.lt.s32.totalorder %v588, 2
    %vm609 = vcmp.lt.s32.totalorder %v588, 3
    %vm610 = vcmp.lt.s32.totalorder %v588, 4
    %v611 = vsel %vm607, %v591, %v594
    %v612 = vsel %vm610, %v600, 2102212464
    %v613 = vsel %vm609, %v597, %v612
    %v614 = vsel %vm608, %v611, %v613
    %v615 = vsel %vm607, %v594, %v597
    %v616 = vsel %vm610, %v603, 920167782
    %v617 = vsel %vm609, %v600, %v616
    %v618 = vsel %vm608, %v615, %v617
    %v619 = vsel %vm607, %v597, %v600
    %v620 = vsel %vm610, %v606, 1326507024
    %v621 = vsel %vm609, %v603, %v620
    %v622 = vsel %vm608, %v619, %v621
    %v623 = vshll.u32 %v583, 8
    %v624 = vmul.u32.u64.compose %v623, %v622
    %v625 = vextract.low.u32 %v624
    %v626 = vextract.high.u32 %v624
    %v627 = vmul.u32.u64.compose %v623, %v618
    %v628 = vextract.low.u32 %v627
    %v629 = vextract.high.u32 %v627
    %v630 = vmul.u32 %v623, %v614
    %v631 = vadd.s32 %v626, %v628
    %vm632 = vc.u32 %v626, %v628
    %v633 = vadd.s32 %v629, 1
    %v634 = vsel %vm632, %v633, %v629
    %v635 = vadd.s32 %v630, %v634
    %v636 = vadd.s32 %v635, 536870912
    %v637 = vshrl.u32 %v636, 30
    %v638 = vshll.u32 %v637, 30
    %v639 = vsub.s32 %v635, %v638
    %vm640 = vcmp.lt.s32.totalorder %v639, 0
    %v641 = vsub.s32 0, %v639
    %v642 = vsel %vm640, %v641, %v639
    %v643 = vclz %v642
    %v644 = vsub.s32 %v643, 2
    %vm645 = vcmp.gt.s32.totalorder 0, %v644
    %v646 = vsel %vm645, 0, %v644
    %v647 = vsub.s32 32, %v646
    %v648 = vshll.u32 %v639, %v646
    %v649 = vshrl.u32 %v631, %v647
    %v650 = vor.u32 %v648, %v649
    %v651 = vsub.s32 4294967266, %v646
    %v652 = vadd.s32 %v651, 127
    %v653 = vshll.u32 %v652, 23
    %v654 = vor.u32 4788187, %v653
    %v655 = vand.u32 2147483647, %v654
    %v657 = vcvt.s32.f32 %v650
    %v658 = vmul.f32 %v657, %v655
    %v659 = vxor.u32 %v658, 2147483648
    %v660 = vsel %vm577, %v659, %v658
    %v661 = vsub.s32 4, %v637
    %v662 = vsel %vm577, %v661, %v637
    %v663 = vsel %vm576, %v153, %v660
    %v664 = vsel %vm576, 0, %v662
    %v665 = vcosq.f32.pop %v663
    %v666 = vsinq.f32.pop %v663
    %vm667 = vweird.f32 %v153
    %v668 = vadd.s32 %v664, 3
    %v669 = vand.u32 %v668, 3
    %vm670 = vcmp.lt.s32.totalorder %v669, 2
    %vm671 = vcmp.eq.s32.totalorder %v669, 0
    %v672 = vxor.u32 %v666, 2147483648
    %v673 = vsel %vm671, %v665, %v672
    %vm674 = vcmp.eq.s32.totalorder %v669, 2
    %v675 = vxor.u32 %v665, 2147483648
    %v676 = vsel %vm674, %v675, %v666
    %v677 = vsel %vm670, %v673, %v676
    %v678 = vsel %vm667, nan, %v677
    %v679 = vand.u32 2147483647, %v154
    %vm680 = vcmp.le.f32.partialorder %v679, 0.7853982
    %vm681 = vcmp.lt.s32.totalorder %v154, 0
    %v682 = vand.u32 %v154, 2139095040
    %v683 = vshrl.u32 %v682, 23
    %v684 = vsub.s32 %v683, 127
    %v685 = vand.u32 2147483647, %v154
    %v686 = vand.u32 %v685, 8388607
    %v687 = vor.u32 %v686, 8388608
    %v688 = vsub.s32 0, %v687
    %v689 = vadd.s32 %v684, 1
    %vm690 = vcmp.gt.s32.totalorder %v689, 0
    %v691 = vsel %vm690, %v689, 0
    %v692 = vshrl.u32 %v691, 5
    %v693 = vand.u32 %v691, 31
    %v694 = vsub.s32 32, %v693
    %v695 = vshrl.u32 683565275, %v694
    %v696 = vshll.u32 683565275, %v693
    %v697 = vshrl.u32 2475754826, %v694
    %v698 = vor.u32 %v696, %v697
    %v699 = vshll.u32 2475754826, %v693
    %v700 = vshrl.u32 2131351028, %v694
    %v701 = vor.u32 %v699, %v700
    %v702 = vshll.u32 2131351028, %v693
    %v703 = vshrl.u32 2102212464, %v694
    %v704 = vor.u32 %v702, %v703
    %v705 = vshll.u32 2102212464, %v693
    %v706 = vshrl.u32 920167782, %v694
    %v707 = vor.u32 %v705, %v706
    %v708 = vshll.u32 920167782, %v693
    %v709 = vshrl.u32 1326507024, %v694
    %v710 = vor.u32 %v708, %v709
    %vm711 = vcmp.lt.s32.totalorder %v692, 1
    %vm712 = vcmp.lt.s32.totalorder %v692, 2
    %vm713 = vcmp.lt.s32.totalorder %v692, 3
    %vm714 = vcmp.lt.s32.totalorder %v692, 4
    %v715 = vsel %vm711, %v695, %v698
    %v716 = vsel %vm714, %v704, 2102212464
    %v717 = vsel %vm713, %v701, %v716
    %v718 = vsel %vm712, %v715, %v717
    %v719 = vsel %vm711, %v698, %v701
    %v720 = vsel %vm714, %v707, 920167782
    %v721 = vsel %vm713, %v704, %v720
    %v722 = vsel %vm712, %v719, %v721
    %v723 = vsel %vm711, %v701, %v704
    %v724 = vsel %vm714, %v710, 1326507024
    %v725 = vsel %vm713, %v707, %v724
    %v726 = vsel %vm712, %v723, %v725
    %v727 = vshll.u32 %v687, 8
    %v728 = vmul.u32.u64.compose %v727, %v726
    %v729 = vextract.low.u32 %v728
    %v730 = vextract.high.u32 %v728
    %v731 = vmul.u32.u64.compose %v727, %v722
    %v732 = vextract.low.u32 %v731
    %v733 = vextract.high.u32 %v731
    %v734 = vmul.u32 %v727, %v718
    %v735 = vadd.s32 %v730, %v732
    %vm736 = vc.u32 %v730, %v732
    %v737 = vadd.s32 %v733, 1
    %v738 = vsel %vm736, %v737, %v733
    %v739 = vadd.s32 %v734, %v738
    %v740 = vadd.s32 %v739, 536870912
    %v741 = vshrl.u32 %v740, 30
    %v742 = vshll.u32 %v741, 30
    %v743 = vsub.s32 %v739, %v742
    %vm744 = vcmp.lt.s32.totalorder %v743, 0
    %v745 = vsub.s32 0, %v743
    %v746 = vsel %vm744, %v745, %v743
    %v747 = vclz %v746
    %v748 = vsub.s32 %v747, 2
    %vm749 = vcmp.gt.s32.totalorder 0, %v748
    %v750 = vsel %vm749, 0, %v748
    %v751 = vsub.s32 32, %v750
    %v752 = vshll.u32 %v743, %v750
    %v753 = vshrl.u32 %v735, %v751
    %v754 = vor.u32 %v752, %v753
    %v755 = vsub.s32 4294967266, %v750
    %v756 = vadd.s32 %v755, 127
    %v757 = vshll.u32 %v756, 23
    %v758 = vor.u32 4788187, %v757
    %v759 = vand.u32 2147483647, %v758
    %v761 = vcvt.s32.f32 %v754
    %v762 = vmul.f32 %v761, %v759
    %v763 = vxor.u32 %v762, 2147483648
    %v764 = vsel %vm681, %v763, %v762
    %v765 = vsub.s32 4, %v741
    %v766 = vsel %vm681, %v765, %v741
    %v767 = vsel %vm680, %v154, %v764
    %v768 = vsel %vm680, 0, %v766
    %v769 = vcosq.f32.pop %v767
    %v770 = vsinq.f32.pop %v767
    %vm771 = vweird.f32 %v154
    %v772 = vadd.s32 %v768, 3
    %v773 = vand.u32 %v772, 3
    %vm774 = vcmp.lt.s32.totalorder %v773, 2
    %vm775 = vcmp.eq.s32.totalorder %v773, 0
    %v776 = vxor.u32 %v770, 2147483648
    %v777 = vsel %vm775, %v769, %v776
    %vm778 = vcmp.eq.s32.totalorder %v773, 2
    %v779 = vxor.u32 %v769, 2147483648
    %v780 = vsel %vm778, %v779, %v770
    %v781 = vsel %vm774, %v777, %v780
    %v782 = vsel %vm771, nan, %v781
    %v783 = vand.u32 2147483647, %v155
    %vm784 = vcmp.le.f32.partialorder %v783, 0.7853982
    %vm785 = vcmp.lt.s32.totalorder %v155, 0
    %v786 = vand.u32 %v155, 2139095040
    %v787 = vshrl.u32 %v786, 23
    %v788 = vsub.s32 %v787, 127
    %v789 = vand.u32 2147483647, %v155
    %v790 = vand.u32 %v789, 8388607
    %v791 = vor.u32 %v790, 8388608
    %v792 = vsub.s32 0, %v791
    %v793 = vadd.s32 %v788, 1
    %vm794 = vcmp.gt.s32.totalorder %v793, 0
    %v795 = vsel %vm794, %v793, 0
    %v796 = vshrl.u32 %v795, 5
    %v797 = vand.u32 %v795, 31
    %v798 = vsub.s32 32, %v797
    %v799 = vshrl.u32 683565275, %v798
    %v800 = vshll.u32 683565275, %v797
    %v801 = vshrl.u32 2475754826, %v798
    %v802 = vor.u32 %v800, %v801
    %v803 = vshll.u32 2475754826, %v797
    %v804 = vshrl.u32 2131351028, %v798
    %v805 = vor.u32 %v803, %v804
    %v806 = vshll.u32 2131351028, %v797
    %v807 = vshrl.u32 2102212464, %v798
    %v808 = vor.u32 %v806, %v807
    %v809 = vshll.u32 2102212464, %v797
    %v810 = vshrl.u32 920167782, %v798
    %v811 = vor.u32 %v809, %v810
    %v812 = vshll.u32 920167782, %v797
    %v813 = vshrl.u32 1326507024, %v798
    %v814 = vor.u32 %v812, %v813
    %vm815 = vcmp.lt.s32.totalorder %v796, 1
    %vm816 = vcmp.lt.s32.totalorder %v796, 2
    %vm817 = vcmp.lt.s32.totalorder %v796, 3
    %vm818 = vcmp.lt.s32.totalorder %v796, 4
    %v819 = vsel %vm815, %v799, %v802
    %v820 = vsel %vm818, %v808, 2102212464
    %v821 = vsel %vm817, %v805, %v820
    %v822 = vsel %vm816, %v819, %v821
    %v823 = vsel %vm815, %v802, %v805
    %v824 = vsel %vm818, %v811, 920167782
    %v825 = vsel %vm817, %v808, %v824
    %v826 = vsel %vm816, %v823, %v825
    %v827 = vsel %vm815, %v805, %v808
    %v828 = vsel %vm818, %v814, 1326507024
    %v829 = vsel %vm817, %v811, %v828
    %v830 = vsel %vm816, %v827, %v829
    %v831 = vshll.u32 %v791, 8
    %v832 = vmul.u32.u64.compose %v831, %v830
    %v833 = vextract.low.u32 %v832
    %v834 = vextract.high.u32 %v832
    %v835 = vmul.u32.u64.compose %v831, %v826
    %v836 = vextract.low.u32 %v835
    %v837 = vextract.high.u32 %v835
    %v838 = vmul.u32 %v831, %v822
    %v839 = vadd.s32 %v834, %v836
    %vm840 = vc.u32 %v834, %v836
    %v841 = vadd.s32 %v837, 1
    %v842 = vsel %vm840, %v841, %v837
    %v843 = vadd.s32 %v838, %v842
    %v844 = vadd.s32 %v843, 536870912
    %v845 = vshrl.u32 %v844, 30
    %v846 = vshll.u32 %v845, 30
    %v847 = vsub.s32 %v843, %v846
    %vm848 = vcmp.lt.s32.totalorder %v847, 0
    %v849 = vsub.s32 0, %v847
    %v850 = vsel %vm848, %v849, %v847
    %v851 = vclz %v850
    %v852 = vsub.s32 %v851, 2
    %vm853 = vcmp.gt.s32.totalorder 0, %v852
    %v854 = vsel %vm853, 0, %v852
    %v855 = vsub.s32 32, %v854
    %v856 = vshll.u32 %v847, %v854
    %v857 = vshrl.u32 %v839, %v855
    %v858 = vor.u32 %v856, %v857
    %v859 = vsub.s32 4294967266, %v854
    %v860 = vadd.s32 %v859, 127
    %v861 = vshll.u32 %v860, 23
    %v862 = vor.u32 4788187, %v861
    %v863 = vand.u32 2147483647, %v862
    %v865 = vcvt.s32.f32 %v858
    %v866 = vmul.f32 %v865, %v863
    %v867 = vxor.u32 %v866, 2147483648
    %v868 = vsel %vm785, %v867, %v866
    %v869 = vsub.s32 4, %v845
    %v870 = vsel %vm785, %v869, %v845
    %v871 = vsel %vm784, %v155, %v868
    %v872 = vsel %vm784, 0, %v870
    %v873 = vcosq.f32.pop %v871
    %v874 = vsinq.f32.pop %v871
    %vm875 = vweird.f32 %v155
    %v876 = vadd.s32 %v872, 3
    %v877 = vand.u32 %v876, 3
    %vm878 = vcmp.lt.s32.totalorder %v877, 2
    %vm879 = vcmp.eq.s32.totalorder %v877, 0
    %v880 = vxor.u32 %v874, 2147483648
    %v881 = vsel %vm879, %v873, %v880
    %vm882 = vcmp.eq.s32.totalorder %v877, 2
    %v883 = vxor.u32 %v873, 2147483648
    %v884 = vsel %vm882, %v883, %v874
    %v885 = vsel %vm878, %v881, %v884
    %v886 = vsel %vm875, nan, %v885
    %v887 = vand.u32 2147483647, %v156
    %vm888 = vcmp.le.f32.partialorder %v887, 0.7853982
    %vm889 = vcmp.lt.s32.totalorder %v156, 0
    %v890 = vand.u32 %v156, 2139095040
    %v891 = vshrl.u32 %v890, 23
    %v892 = vsub.s32 %v891, 127
    %v893 = vand.u32 2147483647, %v156
    %v894 = vand.u32 %v893, 8388607
    %v895 = vor.u32 %v894, 8388608
    %v896 = vsub.s32 0, %v895
    %v897 = vadd.s32 %v892, 1
    %vm898 = vcmp.gt.s32.totalorder %v897, 0
    %v899 = vsel %vm898, %v897, 0
    %v900 = vshrl.u32 %v899, 5
    %v901 = vand.u32 %v899, 31
    %v902 = vsub.s32 32, %v901
    %v903 = vshrl.u32 683565275, %v902
    %v904 = vshll.u32 683565275, %v901
    %v905 = vshrl.u32 2475754826, %v902
    %v906 = vor.u32 %v904, %v905
    %v907 = vshll.u32 2475754826, %v901
    %v908 = vshrl.u32 2131351028, %v902
    %v909 = vor.u32 %v907, %v908
    %v910 = vshll.u32 2131351028, %v901
    %v911 = vshrl.u32 2102212464, %v902
    %v912 = vor.u32 %v910, %v911
    %v913 = vshll.u32 2102212464, %v901
    %v914 = vshrl.u32 920167782, %v902
    %v915 = vor.u32 %v913, %v914
    %v916 = vshll.u32 920167782, %v901
    %v917 = vshrl.u32 1326507024, %v902
    %v918 = vor.u32 %v916, %v917
    %vm919 = vcmp.lt.s32.totalorder %v900, 1
    %vm920 = vcmp.lt.s32.totalorder %v900, 2
    %vm921 = vcmp.lt.s32.totalorder %v900, 3
    %vm922 = vcmp.lt.s32.totalorder %v900, 4
    %v923 = vsel %vm919, %v903, %v906
    %v924 = vsel %vm922, %v912, 2102212464
    %v925 = vsel %vm921, %v909, %v924
    %v926 = vsel %vm920, %v923, %v925
    %v927 = vsel %vm919, %v906, %v909
    %v928 = vsel %vm922, %v915, 920167782
    %v929 = vsel %vm921, %v912, %v928
    %v930 = vsel %vm920, %v927, %v929
    %v931 = vsel %vm919, %v909, %v912
    %v932 = vsel %vm922, %v918, 1326507024
    %v933 = vsel %vm921, %v915, %v932
    %v934 = vsel %vm920, %v931, %v933
    %v935 = vshll.u32 %v895, 8
    %v936 = vmul.u32.u64.compose %v935, %v934
    %v937 = vextract.low.u32 %v936
    %v938 = vextract.high.u32 %v936
    %v939 = vmul.u32.u64.compose %v935, %v930
    %v940 = vextract.low.u32 %v939
    %v941 = vextract.high.u32 %v939
    %v942 = vmul.u32 %v935, %v926
    %v943 = vadd.s32 %v938, %v940
    %vm944 = vc.u32 %v938, %v940
    %v945 = vadd.s32 %v941, 1
    %v946 = vsel %vm944, %v945, %v941
    %v947 = vadd.s32 %v942, %v946
    %v948 = vadd.s32 %v947, 536870912
    %v949 = vshrl.u32 %v948, 30
    %v950 = vshll.u32 %v949, 30
    %v951 = vsub.s32 %v947, %v950
    %vm952 = vcmp.lt.s32.totalorder %v951, 0
    %v953 = vsub.s32 0, %v951
    %v954 = vsel %vm952, %v953, %v951
    %v955 = vclz %v954
    %v956 = vsub.s32 %v955, 2
    %vm957 = vcmp.gt.s32.totalorder 0, %v956
    %v958 = vsel %vm957, 0, %v956
    %v959 = vsub.s32 32, %v958
    %v960 = vshll.u32 %v951, %v958
    %v961 = vshrl.u32 %v943, %v959
    %v962 = vor.u32 %v960, %v961
    %v963 = vsub.s32 4294967266, %v958
    %v964 = vadd.s32 %v963, 127
    %v965 = vshll.u32 %v964, 23
    %v966 = vor.u32 4788187, %v965
    %v967 = vand.u32 2147483647, %v966
    %v969 = vcvt.s32.f32 %v962
    %v970 = vmul.f32 %v969, %v967
    %v971 = vxor.u32 %v970, 2147483648
    %v972 = vsel %vm889, %v971, %v970
    %v973 = vsub.s32 4, %v949
    %v974 = vsel %vm889, %v973, %v949
    %v975 = vsel %vm888, %v156, %v972
    %v976 = vsel %vm888, 0, %v974
    %v977 = vcosq.f32.pop %v975
    %v978 = vsinq.f32.pop %v975
    %vm979 = vweird.f32 %v156
    %v980 = vadd.s32 %v976, 3
    %v981 = vand.u32 %v980, 3
    %vm982 = vcmp.lt.s32.totalorder %v981, 2
    %vm983 = vcmp.eq.s32.totalorder %v981, 0
    %v984 = vxor.u32 %v978, 2147483648
    %v985 = vsel %vm983, %v977, %v984
    %vm986 = vcmp.eq.s32.totalorder %v981, 2
    %v987 = vxor.u32 %v977, 2147483648
    %v988 = vsel %vm986, %v987, %v978
    %v989 = vsel %vm982, %v985, %v988
    %v990 = vsel %vm979, nan, %v989
    %v991 = vand.u32 2147483647, %v149
    %vm992 = vcmp.le.f32.partialorder %v991, 0.7853982
    %vm993 = vcmp.lt.s32.totalorder %v149, 0
    %v994 = vand.u32 %v149, 2139095040
    %v995 = vshrl.u32 %v994, 23
    %v996 = vsub.s32 %v995, 127
    %v997 = vand.u32 2147483647, %v149
    %v998 = vand.u32 %v997, 8388607
    %v999 = vor.u32 %v998, 8388608
    %v1000 = vsub.s32 0, %v999
    %v1001 = vadd.s32 %v996, 1
    %vm1002 = vcmp.gt.s32.totalorder %v1001, 0
    %v1003 = vsel %vm1002, %v1001, 0
    %v1004 = vshrl.u32 %v1003, 5
    %v1005 = vand.u32 %v1003, 31
    %v1006 = vsub.s32 32, %v1005
    %v1007 = vshrl.u32 683565275, %v1006
    %v1008 = vshll.u32 683565275, %v1005
    %v1009 = vshrl.u32 2475754826, %v1006
    %v1010 = vor.u32 %v1008, %v1009
    %v1011 = vshll.u32 2475754826, %v1005
    %v1012 = vshrl.u32 2131351028, %v1006
    %v1013 = vor.u32 %v1011, %v1012
    %v1014 = vshll.u32 2131351028, %v1005
    %v1015 = vshrl.u32 2102212464, %v1006
    %v1016 = vor.u32 %v1014, %v1015
    %v1017 = vshll.u32 2102212464, %v1005
    %v1018 = vshrl.u32 920167782, %v1006
    %v1019 = vor.u32 %v1017, %v1018
    %v1020 = vshll.u32 920167782, %v1005
    %v1021 = vshrl.u32 1326507024, %v1006
    %v1022 = vor.u32 %v1020, %v1021
    %vm1023 = vcmp.lt.s32.totalorder %v1004, 1
    %vm1024 = vcmp.lt.s32.totalorder %v1004, 2
    %vm1025 = vcmp.lt.s32.totalorder %v1004, 3
    %vm1026 = vcmp.lt.s32.totalorder %v1004, 4
    %v1027 = vsel %vm1023, %v1007, %v1010
    %v1028 = vsel %vm1026, %v1016, 2102212464
    %v1029 = vsel %vm1025, %v1013, %v1028
    %v1030 = vsel %vm1024, %v1027, %v1029
    %v1031 = vsel %vm1023, %v1010, %v1013
    %v1032 = vsel %vm1026, %v1019, 920167782
    %v1033 = vsel %vm1025, %v1016, %v1032
    %v1034 = vsel %vm1024, %v1031, %v1033
    %v1035 = vsel %vm1023, %v1013, %v1016
    %v1036 = vsel %vm1026, %v1022, 1326507024
    %v1037 = vsel %vm1025, %v1019, %v1036
    %v1038 = vsel %vm1024, %v1035, %v1037
    %v1039 = vshll.u32 %v999, 8
    %v1040 = vmul.u32.u64.compose %v1039, %v1038
    %v1041 = vextract.low.u32 %v1040
    %v1042 = vextract.high.u32 %v1040
    %v1043 = vmul.u32.u64.compose %v1039, %v1034
    %v1044 = vextract.low.u32 %v1043
    %v1045 = vextract.high.u32 %v1043
    %v1046 = vmul.u32 %v1039, %v1030
    %v1047 = vadd.s32 %v1042, %v1044
    %vm1048 = vc.u32 %v1042, %v1044
    %v1049 = vadd.s32 %v1045, 1
    %v1050 = vsel %vm1048, %v1049, %v1045
    %v1051 = vadd.s32 %v1046, %v1050
    %v1052 = vadd.s32 %v1051, 536870912
    %v1053 = vshrl.u32 %v1052, 30
    %v1054 = vshll.u32 %v1053, 30
    %v1055 = vsub.s32 %v1051, %v1054
    %vm1056 = vcmp.lt.s32.totalorder %v1055, 0
    %v1057 = vsub.s32 0, %v1055
    %v1058 = vsel %vm1056, %v1057, %v1055
    %v1059 = vclz %v1058
    %v1060 = vsub.s32 %v1059, 2
    %vm1061 = vcmp.gt.s32.totalorder 0, %v1060
    %v1062 = vsel %vm1061, 0, %v1060
    %v1063 = vsub.s32 32, %v1062
    %v1064 = vshll.u32 %v1055, %v1062
    %v1065 = vshrl.u32 %v1047, %v1063
    %v1066 = vor.u32 %v1064, %v1065
    %v1067 = vsub.s32 4294967266, %v1062
    %v1068 = vadd.s32 %v1067, 127
    %v1069 = vshll.u32 %v1068, 23
    %v1070 = vor.u32 4788187, %v1069
    %v1071 = vand.u32 2147483647, %v1070
    %v1073 = vcvt.s32.f32 %v1066
    %v1074 = vmul.f32 %v1073, %v1071
    %v1075 = vxor.u32 %v1074, 2147483648
    %v1076 = vsel %vm993, %v1075, %v1074
    %v1077 = vsub.s32 4, %v1053
    %v1078 = vsel %vm993, %v1077, %v1053
    %v1079 = vsel %vm992, %v149, %v1076
    %v1080 = vsel %vm992, 0, %v1078
    %v1081 = vcosq.f32.pop %v1079
    %v1082 = vsinq.f32.pop %v1079
    %vm1083 = vweird.f32 %v149
    %v1084 = vand.u32 %v1080, 3
    %vm1085 = vcmp.lt.s32.totalorder %v1084, 2
    %vm1086 = vcmp.eq.s32.totalorder %v1084, 0
    %v1087 = vxor.u32 %v1082, 2147483648
    %v1088 = vsel %vm1086, %v1081, %v1087
    %vm1089 = vcmp.eq.s32.totalorder %v1084, 2
    %v1090 = vxor.u32 %v1081, 2147483648
    %v1091 = vsel %vm1089, %v1090, %v1082
    %v1092 = vsel %vm1085, %v1088, %v1091
    %v1093 = vsel %vm1083, nan, %v1092
    %v1094 = vand.u32 2147483647, %v150
    %vm1095 = vcmp.le.f32.partialorder %v1094, 0.7853982
    %vm1096 = vcmp.lt.s32.totalorder %v150, 0
    %v1097 = vand.u32 %v150, 2139095040
    %v1098 = vshrl.u32 %v1097, 23
    %v1099 = vsub.s32 %v1098, 127
    %v1100 = vand.u32 2147483647, %v150
    %v1101 = vand.u32 %v1100, 8388607
    %v1102 = vor.u32 %v1101, 8388608
    %v1103 = vsub.s32 0, %v1102
    %v1104 = vadd.s32 %v1099, 1
    %vm1105 = vcmp.gt.s32.totalorder %v1104, 0
    %v1106 = vsel %vm1105, %v1104, 0
    %v1107 = vshrl.u32 %v1106, 5
    %v1108 = vand.u32 %v1106, 31
    %v1109 = vsub.s32 32, %v1108
    %v1110 = vshrl.u32 683565275, %v1109
    %v1111 = vshll.u32 683565275, %v1108
    %v1112 = vshrl.u32 2475754826, %v1109
    %v1113 = vor.u32 %v1111, %v1112
    %v1114 = vshll.u32 2475754826, %v1108
    %v1115 = vshrl.u32 2131351028, %v1109
    %v1116 = vor.u32 %v1114, %v1115
    %v1117 = vshll.u32 2131351028, %v1108
    %v1118 = vshrl.u32 2102212464, %v1109
    %v1119 = vor.u32 %v1117, %v1118
    %v1120 = vshll.u32 2102212464, %v1108
    %v1121 = vshrl.u32 920167782, %v1109
    %v1122 = vor.u32 %v1120, %v1121
    %v1123 = vshll.u32 920167782, %v1108
    %v1124 = vshrl.u32 1326507024, %v1109
    %v1125 = vor.u32 %v1123, %v1124
    %vm1126 = vcmp.lt.s32.totalorder %v1107, 1
    %vm1127 = vcmp.lt.s32.totalorder %v1107, 2
    %vm1128 = vcmp.lt.s32.totalorder %v1107, 3
    %vm1129 = vcmp.lt.s32.totalorder %v1107, 4
    %v1130 = vsel %vm1126, %v1110, %v1113
    %v1131 = vsel %vm1129, %v1119, 2102212464
    %v1132 = vsel %vm1128, %v1116, %v1131
    %v1133 = vsel %vm1127, %v1130, %v1132
    %v1134 = vsel %vm1126, %v1113, %v1116
    %v1135 = vsel %vm1129, %v1122, 920167782
    %v1136 = vsel %vm1128, %v1119, %v1135
    %v1137 = vsel %vm1127, %v1134, %v1136
    %v1138 = vsel %vm1126, %v1116, %v1119
    %v1139 = vsel %vm1129, %v1125, 1326507024
    %v1140 = vsel %vm1128, %v1122, %v1139
    %v1141 = vsel %vm1127, %v1138, %v1140
    %v1142 = vshll.u32 %v1102, 8
    %v1143 = vmul.u32.u64.compose %v1142, %v1141
    %v1144 = vextract.low.u32 %v1143
    %v1145 = vextract.high.u32 %v1143
    %v1146 = vmul.u32.u64.compose %v1142, %v1137
    %v1147 = vextract.low.u32 %v1146
    %v1148 = vextract.high.u32 %v1146
    %v1149 = vmul.u32 %v1142, %v1133
    %v1150 = vadd.s32 %v1145, %v1147
    %vm1151 = vc.u32 %v1145, %v1147
    %v1152 = vadd.s32 %v1148, 1
    %v1153 = vsel %vm1151, %v1152, %v1148
    %v1154 = vadd.s32 %v1149, %v1153
    %v1155 = vadd.s32 %v1154, 536870912
    %v1156 = vshrl.u32 %v1155, 30
    %v1157 = vshll.u32 %v1156, 30
    %v1158 = vsub.s32 %v1154, %v1157
    %vm1159 = vcmp.lt.s32.totalorder %v1158, 0
    %v1160 = vsub.s32 0, %v1158
    %v1161 = vsel %vm1159, %v1160, %v1158
    %v1162 = vclz %v1161
    %v1163 = vsub.s32 %v1162, 2
    %vm1164 = vcmp.gt.s32.totalorder 0, %v1163
    %v1165 = vsel %vm1164, 0, %v1163
    %v1166 = vsub.s32 32, %v1165
    %v1167 = vshll.u32 %v1158, %v1165
    %v1168 = vshrl.u32 %v1150, %v1166
    %v1169 = vor.u32 %v1167, %v1168
    %v1170 = vsub.s32 4294967266, %v1165
    %v1171 = vadd.s32 %v1170, 127
    %v1172 = vshll.u32 %v1171, 23
    %v1173 = vor.u32 4788187, %v1172
    %v1174 = vand.u32 2147483647, %v1173
    %v1176 = vcvt.s32.f32 %v1169
    %v1177 = vmul.f32 %v1176, %v1174
    %v1178 = vxor.u32 %v1177, 2147483648
    %v1179 = vsel %vm1096, %v1178, %v1177
    %v1180 = vsub.s32 4, %v1156
    %v1181 = vsel %vm1096, %v1180, %v1156
    %v1182 = vsel %vm1095, %v150, %v1179
    %v1183 = vsel %vm1095, 0, %v1181
    %v1184 = vcosq.f32.pop %v1182
    %v1185 = vsinq.f32.pop %v1182
    %vm1186 = vweird.f32 %v150
    %v1187 = vand.u32 %v1183, 3
    %vm1188 = vcmp.lt.s32.totalorder %v1187, 2
    %vm1189 = vcmp.eq.s32.totalorder %v1187, 0
    %v1190 = vxor.u32 %v1185, 2147483648
    %v1191 = vsel %vm1189, %v1184, %v1190
    %vm1192 = vcmp.eq.s32.totalorder %v1187, 2
    %v1193 = vxor.u32 %v1184, 2147483648
    %v1194 = vsel %vm1192, %v1193, %v1185
    %v1195 = vsel %vm1188, %v1191, %v1194
    %v1196 = vsel %vm1186, nan, %v1195
    %v1197 = vand.u32 2147483647, %v151
    %vm1198 = vcmp.le.f32.partialorder %v1197, 0.7853982
    %vm1199 = vcmp.lt.s32.totalorder %v151, 0
    %v1200 = vand.u32 %v151, 2139095040
    %v1201 = vshrl.u32 %v1200, 23
    %v1202 = vsub.s32 %v1201, 127
    %v1203 = vand.u32 2147483647, %v151
    %v1204 = vand.u32 %v1203, 8388607
    %v1205 = vor.u32 %v1204, 8388608
    %v1206 = vsub.s32 0, %v1205
    %v1207 = vadd.s32 %v1202, 1
    %vm1208 = vcmp.gt.s32.totalorder %v1207, 0
    %v1209 = vsel %vm1208, %v1207, 0
    %v1210 = vshrl.u32 %v1209, 5
    %v1211 = vand.u32 %v1209, 31
    %v1212 = vsub.s32 32, %v1211
    %v1213 = vshrl.u32 683565275, %v1212
    %v1214 = vshll.u32 683565275, %v1211
    %v1215 = vshrl.u32 2475754826, %v1212
    %v1216 = vor.u32 %v1214, %v1215
    %v1217 = vshll.u32 2475754826, %v1211
    %v1218 = vshrl.u32 2131351028, %v1212
    %v1219 = vor.u32 %v1217, %v1218
    %v1220 = vshll.u32 2131351028, %v1211
    %v1221 = vshrl.u32 2102212464, %v1212
    %v1222 = vor.u32 %v1220, %v1221
    %v1223 = vshll.u32 2102212464, %v1211
    %v1224 = vshrl.u32 920167782, %v1212
    %v1225 = vor.u32 %v1223, %v1224
    %v1226 = vshll.u32 920167782, %v1211
    %v1227 = vshrl.u32 1326507024, %v1212
    %v1228 = vor.u32 %v1226, %v1227
    %vm1229 = vcmp.lt.s32.totalorder %v1210, 1
    %vm1230 = vcmp.lt.s32.totalorder %v1210, 2
    %vm1231 = vcmp.lt.s32.totalorder %v1210, 3
    %vm1232 = vcmp.lt.s32.totalorder %v1210, 4
    %v1233 = vsel %vm1229, %v1213, %v1216
    %v1234 = vsel %vm1232, %v1222, 2102212464
    %v1235 = vsel %vm1231, %v1219, %v1234
    %v1236 = vsel %vm1230, %v1233, %v1235
    %v1237 = vsel %vm1229, %v1216, %v1219
    %v1238 = vsel %vm1232, %v1225, 920167782
    %v1239 = vsel %vm1231, %v1222, %v1238
    %v1240 = vsel %vm1230, %v1237, %v1239
    %v1241 = vsel %vm1229, %v1219, %v1222
    %v1242 = vsel %vm1232, %v1228, 1326507024
    %v1243 = vsel %vm1231, %v1225, %v1242
    %v1244 = vsel %vm1230, %v1241, %v1243
    %v1245 = vshll.u32 %v1205, 8
    %v1246 = vmul.u32.u64.compose %v1245, %v1244
    %v1247 = vextract.low.u32 %v1246
    %v1248 = vextract.high.u32 %v1246
    %v1249 = vmul.u32.u64.compose %v1245, %v1240
    %v1250 = vextract.low.u32 %v1249
    %v1251 = vextract.high.u32 %v1249
    %v1252 = vmul.u32 %v1245, %v1236
    %v1253 = vadd.s32 %v1248, %v1250
    %vm1254 = vc.u32 %v1248, %v1250
    %v1255 = vadd.s32 %v1251, 1
    %v1256 = vsel %vm1254, %v1255, %v1251
    %v1257 = vadd.s32 %v1252, %v1256
    %v1258 = vadd.s32 %v1257, 536870912
    %v1259 = vshrl.u32 %v1258, 30
    %v1260 = vshll.u32 %v1259, 30
    %v1261 = vsub.s32 %v1257, %v1260
    %vm1262 = vcmp.lt.s32.totalorder %v1261, 0
    %v1263 = vsub.s32 0, %v1261
    %v1264 = vsel %vm1262, %v1263, %v1261
    %v1265 = vclz %v1264
    %v1266 = vsub.s32 %v1265, 2
    %vm1267 = vcmp.gt.s32.totalorder 0, %v1266
    %v1268 = vsel %vm1267, 0, %v1266
    %v1269 = vsub.s32 32, %v1268
    %v1270 = vshll.u32 %v1261, %v1268
    %v1271 = vshrl.u32 %v1253, %v1269
    %v1272 = vor.u32 %v1270, %v1271
    %v1273 = vsub.s32 4294967266, %v1268
    %v1274 = vadd.s32 %v1273, 127
    %v1275 = vshll.u32 %v1274, 23
    %v1276 = vor.u32 4788187, %v1275
    %v1277 = vand.u32 2147483647, %v1276
    %v1279 = vcvt.s32.f32 %v1272
    %v1280 = vmul.f32 %v1279, %v1277
    %v1281 = vxor.u32 %v1280, 2147483648
    %v1282 = vsel %vm1199, %v1281, %v1280
    %v1283 = vsub.s32 4, %v1259
    %v1284 = vsel %vm1199, %v1283, %v1259
    %v1285 = vsel %vm1198, %v151, %v1282
    %v1286 = vsel %vm1198, 0, %v1284
    %v1287 = vcosq.f32.pop %v1285
    %v1288 = vsinq.f32.pop %v1285
    %vm1289 = vweird.f32 %v151
    %v1290 = vand.u32 %v1286, 3
    %vm1291 = vcmp.lt.s32.totalorder %v1290, 2
    %vm1292 = vcmp.eq.s32.totalorder %v1290, 0
    %v1293 = vxor.u32 %v1288, 2147483648
    %v1294 = vsel %vm1292, %v1287, %v1293
    %vm1295 = vcmp.eq.s32.totalorder %v1290, 2
    %v1296 = vxor.u32 %v1287, 2147483648
    %v1297 = vsel %vm1295, %v1296, %v1288
    %v1298 = vsel %vm1291, %v1294, %v1297
    %v1299 = vsel %vm1289, nan, %v1298
    %v1300 = vand.u32 2147483647, %v152
    %vm1301 = vcmp.le.f32.partialorder %v1300, 0.7853982
    %vm1302 = vcmp.lt.s32.totalorder %v152, 0
    %v1303 = vand.u32 %v152, 2139095040
    %v1304 = vshrl.u32 %v1303, 23
    %v1305 = vsub.s32 %v1304, 127
    %v1306 = vand.u32 2147483647, %v152
    %v1307 = vand.u32 %v1306, 8388607
    %v1308 = vor.u32 %v1307, 8388608
    %v1309 = vsub.s32 0, %v1308
    %v1310 = vadd.s32 %v1305, 1
    %vm1311 = vcmp.gt.s32.totalorder %v1310, 0
    %v1312 = vsel %vm1311, %v1310, 0
    %v1313 = vshrl.u32 %v1312, 5
    %v1314 = vand.u32 %v1312, 31
    %v1315 = vsub.s32 32, %v1314
    %v1316 = vshrl.u32 683565275, %v1315
    %v1317 = vshll.u32 683565275, %v1314
    %v1318 = vshrl.u32 2475754826, %v1315
    %v1319 = vor.u32 %v1317, %v1318
    %v1320 = vshll.u32 2475754826, %v1314
    %v1321 = vshrl.u32 2131351028, %v1315
    %v1322 = vor.u32 %v1320, %v1321
    %v1323 = vshll.u32 2131351028, %v1314
    %v1324 = vshrl.u32 2102212464, %v1315
    %v1325 = vor.u32 %v1323, %v1324
    %v1326 = vshll.u32 2102212464, %v1314
    %v1327 = vshrl.u32 920167782, %v1315
    %v1328 = vor.u32 %v1326, %v1327
    %v1329 = vshll.u32 920167782, %v1314
    %v1330 = vshrl.u32 1326507024, %v1315
    %v1331 = vor.u32 %v1329, %v1330
    %vm1332 = vcmp.lt.s32.totalorder %v1313, 1
    %vm1333 = vcmp.lt.s32.totalorder %v1313, 2
    %vm1334 = vcmp.lt.s32.totalorder %v1313, 3
    %vm1335 = vcmp.lt.s32.totalorder %v1313, 4
    %v1336 = vsel %vm1332, %v1316, %v1319
    %v1337 = vsel %vm1335, %v1325, 2102212464
    %v1338 = vsel %vm1334, %v1322, %v1337
    %v1339 = vsel %vm1333, %v1336, %v1338
    %v1340 = vsel %vm1332, %v1319, %v1322
    %v1341 = vsel %vm1335, %v1328, 920167782
    %v1342 = vsel %vm1334, %v1325, %v1341
    %v1343 = vsel %vm1333, %v1340, %v1342
    %v1344 = vsel %vm1332, %v1322, %v1325
    %v1345 = vsel %vm1335, %v1331, 1326507024
    %v1346 = vsel %vm1334, %v1328, %v1345
    %v1347 = vsel %vm1333, %v1344, %v1346
    %v1348 = vshll.u32 %v1308, 8
    %v1349 = vmul.u32.u64.compose %v1348, %v1347
    %v1350 = vextract.low.u32 %v1349
    %v1351 = vextract.high.u32 %v1349
    %v1352 = vmul.u32.u64.compose %v1348, %v1343
    %v1353 = vextract.low.u32 %v1352
    %v1354 = vextract.high.u32 %v1352
    %v1355 = vmul.u32 %v1348, %v1339
    %v1356 = vadd.s32 %v1351, %v1353
    %vm1357 = vc.u32 %v1351, %v1353
    %v1358 = vadd.s32 %v1354, 1
    %v1359 = vsel %vm1357, %v1358, %v1354
    %v1360 = vadd.s32 %v1355, %v1359
    %v1361 = vadd.s32 %v1360, 536870912
    %v1362 = vshrl.u32 %v1361, 30
    %v1363 = vshll.u32 %v1362, 30
    %v1364 = vsub.s32 %v1360, %v1363
    %vm1365 = vcmp.lt.s32.totalorder %v1364, 0
    %v1366 = vsub.s32 0, %v1364
    %v1367 = vsel %vm1365, %v1366, %v1364
    %v1368 = vclz %v1367
    %v1369 = vsub.s32 %v1368, 2
    %vm1370 = vcmp.gt.s32.totalorder 0, %v1369
    %v1371 = vsel %vm1370, 0, %v1369
    %v1372 = vsub.s32 32, %v1371
    %v1373 = vshll.u32 %v1364, %v1371
    %v1374 = vshrl.u32 %v1356, %v1372
    %v1375 = vor.u32 %v1373, %v1374
    %v1376 = vsub.s32 4294967266, %v1371
    %v1377 = vadd.s32 %v1376, 127
    %v1378 = vshll.u32 %v1377, 23
    %v1379 = vor.u32 4788187, %v1378
    %v1380 = vand.u32 2147483647, %v1379
    %v1382 = vcvt.s32.f32 %v1375
    %v1383 = vmul.f32 %v1382, %v1380
    %v1384 = vxor.u32 %v1383, 2147483648
    %v1385 = vsel %vm1302, %v1384, %v1383
    %v1386 = vsub.s32 4, %v1362
    %v1387 = vsel %vm1302, %v1386, %v1362
    %v1388 = vsel %vm1301, %v152, %v1385
    %v1389 = vsel %vm1301, 0, %v1387
    %v1390 = vcosq.f32.pop %v1388
    %v1391 = vsinq.f32.pop %v1388
    %vm1392 = vweird.f32 %v152
    %v1393 = vand.u32 %v1389, 3
    %vm1394 = vcmp.lt.s32.totalorder %v1393, 2
    %vm1395 = vcmp.eq.s32.totalorder %v1393, 0
    %v1396 = vxor.u32 %v1391, 2147483648
    %v1397 = vsel %vm1395, %v1390, %v1396
    %vm1398 = vcmp.eq.s32.totalorder %v1393, 2
    %v1399 = vxor.u32 %v1390, 2147483648
    %v1400 = vsel %vm1398, %v1399, %v1391
    %v1401 = vsel %vm1394, %v1397, %v1400
    %v1402 = vsel %vm1392, nan, %v1401
    %v1403 = vand.u32 2147483647, %v153
    %vm1404 = vcmp.le.f32.partialorder %v1403, 0.7853982
    %vm1405 = vcmp.lt.s32.totalorder %v153, 0
    %v1406 = vand.u32 %v153, 2139095040
    %v1407 = vshrl.u32 %v1406, 23
    %v1408 = vsub.s32 %v1407, 127
    %v1409 = vand.u32 2147483647, %v153
    %v1410 = vand.u32 %v1409, 8388607
    %v1411 = vor.u32 %v1410, 8388608
    %v1412 = vsub.s32 0, %v1411
    %v1413 = vadd.s32 %v1408, 1
    %vm1414 = vcmp.gt.s32.totalorder %v1413, 0
    %v1415 = vsel %vm1414, %v1413, 0
    %v1416 = vshrl.u32 %v1415, 5
    %v1417 = vand.u32 %v1415, 31
    %v1418 = vsub.s32 32, %v1417
    %v1419 = vshrl.u32 683565275, %v1418
    %v1420 = vshll.u32 683565275, %v1417
    %v1421 = vshrl.u32 2475754826, %v1418
    %v1422 = vor.u32 %v1420, %v1421
    %v1423 = vshll.u32 2475754826, %v1417
    %v1424 = vshrl.u32 2131351028, %v1418
    %v1425 = vor.u32 %v1423, %v1424
    %v1426 = vshll.u32 2131351028, %v1417
    %v1427 = vshrl.u32 2102212464, %v1418
    %v1428 = vor.u32 %v1426, %v1427
    %v1429 = vshll.u32 2102212464, %v1417
    %v1430 = vshrl.u32 920167782, %v1418
    %v1431 = vor.u32 %v1429, %v1430
    %v1432 = vshll.u32 920167782, %v1417
    %v1433 = vshrl.u32 1326507024, %v1418
    %v1434 = vor.u32 %v1432, %v1433
    %vm1435 = vcmp.lt.s32.totalorder %v1416, 1
    %vm1436 = vcmp.lt.s32.totalorder %v1416, 2
    %vm1437 = vcmp.lt.s32.totalorder %v1416, 3
    %vm1438 = vcmp.lt.s32.totalorder %v1416, 4
    %v1439 = vsel %vm1435, %v1419, %v1422
    %v1440 = vsel %vm1438, %v1428, 2102212464
    %v1441 = vsel %vm1437, %v1425, %v1440
    %v1442 = vsel %vm1436, %v1439, %v1441
    %v1443 = vsel %vm1435, %v1422, %v1425
    %v1444 = vsel %vm1438, %v1431, 920167782
    %v1445 = vsel %vm1437, %v1428, %v1444
    %v1446 = vsel %vm1436, %v1443, %v1445
    %v1447 = vsel %vm1435, %v1425, %v1428
    %v1448 = vsel %vm1438, %v1434, 1326507024
    %v1449 = vsel %vm1437, %v1431, %v1448
    %v1450 = vsel %vm1436, %v1447, %v1449
    %v1451 = vshll.u32 %v1411, 8
    %v1452 = vmul.u32.u64.compose %v1451, %v1450
    %v1453 = vextract.low.u32 %v1452
    %v1454 = vextract.high.u32 %v1452
    %v1455 = vmul.u32.u64.compose %v1451, %v1446
    %v1456 = vextract.low.u32 %v1455
    %v1457 = vextract.high.u32 %v1455
    %v1458 = vmul.u32 %v1451, %v1442
    %v1459 = vadd.s32 %v1454, %v1456
    %vm1460 = vc.u32 %v1454, %v1456
    %v1461 = vadd.s32 %v1457, 1
    %v1462 = vsel %vm1460, %v1461, %v1457
    %v1463 = vadd.s32 %v1458, %v1462
    %v1464 = vadd.s32 %v1463, 536870912
    %v1465 = vshrl.u32 %v1464, 30
    %v1466 = vshll.u32 %v1465, 30
    %v1467 = vsub.s32 %v1463, %v1466
    %vm1468 = vcmp.lt.s32.totalorder %v1467, 0
    %v1469 = vsub.s32 0, %v1467
    %v1470 = vsel %vm1468, %v1469, %v1467
    %v1471 = vclz %v1470
    %v1472 = vsub.s32 %v1471, 2
    %vm1473 = vcmp.gt.s32.totalorder 0, %v1472
    %v1474 = vsel %vm1473, 0, %v1472
    %v1475 = vsub.s32 32, %v1474
    %v1476 = vshll.u32 %v1467, %v1474
    %v1477 = vshrl.u32 %v1459, %v1475
    %v1478 = vor.u32 %v1476, %v1477
    %v1479 = vsub.s32 4294967266, %v1474
    %v1480 = vadd.s32 %v1479, 127
    %v1481 = vshll.u32 %v1480, 23
    %v1482 = vor.u32 4788187, %v1481
    %v1483 = vand.u32 2147483647, %v1482
    %v1485 = vcvt.s32.f32 %v1478
    %v1486 = vmul.f32 %v1485, %v1483
    %v1487 = vxor.u32 %v1486, 2147483648
    %v1488 = vsel %vm1405, %v1487, %v1486
    %v1489 = vsub.s32 4, %v1465
    %v1490 = vsel %vm1405, %v1489, %v1465
    %v1491 = vsel %vm1404, %v153, %v1488
    %v1492 = vsel %vm1404, 0, %v1490
    %v1493 = vcosq.f32.pop %v1491
    %v1494 = vsinq.f32.pop %v1491
    %vm1495 = vweird.f32 %v153
    %v1496 = vand.u32 %v1492, 3
    %vm1497 = vcmp.lt.s32.totalorder %v1496, 2
    %vm1498 = vcmp.eq.s32.totalorder %v1496, 0
    %v1499 = vxor.u32 %v1494, 2147483648
    %v1500 = vsel %vm1498, %v1493, %v1499
    %vm1501 = vcmp.eq.s32.totalorder %v1496, 2
    %v1502 = vxor.u32 %v1493, 2147483648
    %v1503 = vsel %vm1501, %v1502, %v1494
    %v1504 = vsel %vm1497, %v1500, %v1503
    %v1505 = vsel %vm1495, nan, %v1504
    %v1506 = vand.u32 2147483647, %v154
    %vm1507 = vcmp.le.f32.partialorder %v1506, 0.7853982
    %vm1508 = vcmp.lt.s32.totalorder %v154, 0
    %v1509 = vand.u32 %v154, 2139095040
    %v1510 = vshrl.u32 %v1509, 23
    %v1511 = vsub.s32 %v1510, 127
    %v1512 = vand.u32 2147483647, %v154
    %v1513 = vand.u32 %v1512, 8388607
    %v1514 = vor.u32 %v1513, 8388608
    %v1515 = vsub.s32 0, %v1514
    %v1516 = vadd.s32 %v1511, 1
    %vm1517 = vcmp.gt.s32.totalorder %v1516, 0
    %v1518 = vsel %vm1517, %v1516, 0
    %v1519 = vshrl.u32 %v1518, 5
    %v1520 = vand.u32 %v1518, 31
    %v1521 = vsub.s32 32, %v1520
    %v1522 = vshrl.u32 683565275, %v1521
    %v1523 = vshll.u32 683565275, %v1520
    %v1524 = vshrl.u32 2475754826, %v1521
    %v1525 = vor.u32 %v1523, %v1524
    %v1526 = vshll.u32 2475754826, %v1520
    %v1527 = vshrl.u32 2131351028, %v1521
    %v1528 = vor.u32 %v1526, %v1527
    %v1529 = vshll.u32 2131351028, %v1520
    %v1530 = vshrl.u32 2102212464, %v1521
    %v1531 = vor.u32 %v1529, %v1530
    %v1532 = vshll.u32 2102212464, %v1520
    %v1533 = vshrl.u32 920167782, %v1521
    %v1534 = vor.u32 %v1532, %v1533
    %v1535 = vshll.u32 920167782, %v1520
    %v1536 = vshrl.u32 1326507024, %v1521
    %v1537 = vor.u32 %v1535, %v1536
    %vm1538 = vcmp.lt.s32.totalorder %v1519, 1
    %vm1539 = vcmp.lt.s32.totalorder %v1519, 2
    %vm1540 = vcmp.lt.s32.totalorder %v1519, 3
    %vm1541 = vcmp.lt.s32.totalorder %v1519, 4
    %v1542 = vsel %vm1538, %v1522, %v1525
    %v1543 = vsel %vm1541, %v1531, 2102212464
    %v1544 = vsel %vm1540, %v1528, %v1543
    %v1545 = vsel %vm1539, %v1542, %v1544
    %v1546 = vsel %vm1538, %v1525, %v1528
    %v1547 = vsel %vm1541, %v1534, 920167782
    %v1548 = vsel %vm1540, %v1531, %v1547
    %v1549 = vsel %vm1539, %v1546, %v1548
    %v1550 = vsel %vm1538, %v1528, %v1531
    %v1551 = vsel %vm1541, %v1537, 1326507024
    %v1552 = vsel %vm1540, %v1534, %v1551
    %v1553 = vsel %vm1539, %v1550, %v1552
    %v1554 = vshll.u32 %v1514, 8
    %v1555 = vmul.u32.u64.compose %v1554, %v1553
    %v1556 = vextract.low.u32 %v1555
    %v1557 = vextract.high.u32 %v1555
    %v1558 = vmul.u32.u64.compose %v1554, %v1549
    %v1559 = vextract.low.u32 %v1558
    %v1560 = vextract.high.u32 %v1558
    %v1561 = vmul.u32 %v1554, %v1545
    %v1562 = vadd.s32 %v1557, %v1559
    %vm1563 = vc.u32 %v1557, %v1559
    %v1564 = vadd.s32 %v1560, 1
    %v1565 = vsel %vm1563, %v1564, %v1560
    %v1566 = vadd.s32 %v1561, %v1565
    %v1567 = vadd.s32 %v1566, 536870912
    %v1568 = vshrl.u32 %v1567, 30
    %v1569 = vshll.u32 %v1568, 30
    %v1570 = vsub.s32 %v1566, %v1569
    %vm1571 = vcmp.lt.s32.totalorder %v1570, 0
    %v1572 = vsub.s32 0, %v1570
    %v1573 = vsel %vm1571, %v1572, %v1570
    %v1574 = vclz %v1573
    %v1575 = vsub.s32 %v1574, 2
    %vm1576 = vcmp.gt.s32.totalorder 0, %v1575
    %v1577 = vsel %vm1576, 0, %v1575
    %v1578 = vsub.s32 32, %v1577
    %v1579 = vshll.u32 %v1570, %v1577
    %v1580 = vshrl.u32 %v1562, %v1578
    %v1581 = vor.u32 %v1579, %v1580
    %v1582 = vsub.s32 4294967266, %v1577
    %v1583 = vadd.s32 %v1582, 127
    %v1584 = vshll.u32 %v1583, 23
    %v1585 = vor.u32 4788187, %v1584
    %v1586 = vand.u32 2147483647, %v1585
    %v1588 = vcvt.s32.f32 %v1581
    %v1589 = vmul.f32 %v1588, %v1586
    %v1590 = vxor.u32 %v1589, 2147483648
    %v1591 = vsel %vm1508, %v1590, %v1589
    %v1592 = vsub.s32 4, %v1568
    %v1593 = vsel %vm1508, %v1592, %v1568
    %v1594 = vsel %vm1507, %v154, %v1591
    %v1595 = vsel %vm1507, 0, %v1593
    %v1596 = vcosq.f32.pop %v1594
    %v1597 = vsinq.f32.pop %v1594
    %vm1598 = vweird.f32 %v154
    %v1599 = vand.u32 %v1595, 3
    %vm1600 = vcmp.lt.s32.totalorder %v1599, 2
    %vm1601 = vcmp.eq.s32.totalorder %v1599, 0
    %v1602 = vxor.u32 %v1597, 2147483648
    %v1603 = vsel %vm1601, %v1596, %v1602
    %vm1604 = vcmp.eq.s32.totalorder %v1599, 2
    %v1605 = vxor.u32 %v1596, 2147483648
    %v1606 = vsel %vm1604, %v1605, %v1597
    %v1607 = vsel %vm1600, %v1603, %v1606
    %v1608 = vsel %vm1598, nan, %v1607
    %v1609 = vand.u32 2147483647, %v155
    %vm1610 = vcmp.le.f32.partialorder %v1609, 0.7853982
    %vm1611 = vcmp.lt.s32.totalorder %v155, 0
    %v1612 = vand.u32 %v155, 2139095040
    %v1613 = vshrl.u32 %v1612, 23
    %v1614 = vsub.s32 %v1613, 127
    %v1615 = vand.u32 2147483647, %v155
    %v1616 = vand.u32 %v1615, 8388607
    %v1617 = vor.u32 %v1616, 8388608
    %v1618 = vsub.s32 0, %v1617
    %v1619 = vadd.s32 %v1614, 1
    %vm1620 = vcmp.gt.s32.totalorder %v1619, 0
    %v1621 = vsel %vm1620, %v1619, 0
    %v1622 = vshrl.u32 %v1621, 5
    %v1623 = vand.u32 %v1621, 31
    %v1624 = vsub.s32 32, %v1623
    %v1625 = vshrl.u32 683565275, %v1624
    %v1626 = vshll.u32 683565275, %v1623
    %v1627 = vshrl.u32 2475754826, %v1624
    %v1628 = vor.u32 %v1626, %v1627
    %v1629 = vshll.u32 2475754826, %v1623
    %v1630 = vshrl.u32 2131351028, %v1624
    %v1631 = vor.u32 %v1629, %v1630
    %v1632 = vshll.u32 2131351028, %v1623
    %v1633 = vshrl.u32 2102212464, %v1624
    %v1634 = vor.u32 %v1632, %v1633
    %v1635 = vshll.u32 2102212464, %v1623
    %v1636 = vshrl.u32 920167782, %v1624
    %v1637 = vor.u32 %v1635, %v1636
    %v1638 = vshll.u32 920167782, %v1623
    %v1639 = vshrl.u32 1326507024, %v1624
    %v1640 = vor.u32 %v1638, %v1639
    %vm1641 = vcmp.lt.s32.totalorder %v1622, 1
    %vm1642 = vcmp.lt.s32.totalorder %v1622, 2
    %vm1643 = vcmp.lt.s32.totalorder %v1622, 3
    %vm1644 = vcmp.lt.s32.totalorder %v1622, 4
    %v1645 = vsel %vm1641, %v1625, %v1628
    %v1646 = vsel %vm1644, %v1634, 2102212464
    %v1647 = vsel %vm1643, %v1631, %v1646
    %v1648 = vsel %vm1642, %v1645, %v1647
    %v1649 = vsel %vm1641, %v1628, %v1631
    %v1650 = vsel %vm1644, %v1637, 920167782
    %v1651 = vsel %vm1643, %v1634, %v1650
    %v1652 = vsel %vm1642, %v1649, %v1651
    %v1653 = vsel %vm1641, %v1631, %v1634
    %v1654 = vsel %vm1644, %v1640, 1326507024
    %v1655 = vsel %vm1643, %v1637, %v1654
    %v1656 = vsel %vm1642, %v1653, %v1655
    %v1657 = vshll.u32 %v1617, 8
    %v1658 = vmul.u32.u64.compose %v1657, %v1656
    %v1659 = vextract.low.u32 %v1658
    %v1660 = vextract.high.u32 %v1658
    %v1661 = vmul.u32.u64.compose %v1657, %v1652
    %v1662 = vextract.low.u32 %v1661
    %v1663 = vextract.high.u32 %v1661
    %v1664 = vmul.u32 %v1657, %v1648
    %v1665 = vadd.s32 %v1660, %v1662
    %vm1666 = vc.u32 %v1660, %v1662
    %v1667 = vadd.s32 %v1663, 1
    %v1668 = vsel %vm1666, %v1667, %v1663
    %v1669 = vadd.s32 %v1664, %v1668
    %v1670 = vadd.s32 %v1669, 536870912
    %v1671 = vshrl.u32 %v1670, 30
    %v1672 = vshll.u32 %v1671, 30
    %v1673 = vsub.s32 %v1669, %v1672
    %vm1674 = vcmp.lt.s32.totalorder %v1673, 0
    %v1675 = vsub.s32 0, %v1673
    %v1676 = vsel %vm1674, %v1675, %v1673
    %v1677 = vclz %v1676
    %v1678 = vsub.s32 %v1677, 2
    %vm1679 = vcmp.gt.s32.totalorder 0, %v1678
    %v1680 = vsel %vm1679, 0, %v1678
    %v1681 = vsub.s32 32, %v1680
    %v1682 = vshll.u32 %v1673, %v1680
    %v1683 = vshrl.u32 %v1665, %v1681
    %v1684 = vor.u32 %v1682, %v1683
    %v1685 = vsub.s32 4294967266, %v1680
    %v1686 = vadd.s32 %v1685, 127
    %v1687 = vshll.u32 %v1686, 23
    %v1688 = vor.u32 4788187, %v1687
    %v1689 = vand.u32 2147483647, %v1688
    %v1691 = vcvt.s32.f32 %v1684
    %v1692 = vmul.f32 %v1691, %v1689
    %v1693 = vxor.u32 %v1692, 2147483648
    %v1694 = vsel %vm1611, %v1693, %v1692
    %v1695 = vsub.s32 4, %v1671
    %v1696 = vsel %vm1611, %v1695, %v1671
    %v1697 = vsel %vm1610, %v155, %v1694
    %v1698 = vsel %vm1610, 0, %v1696
    %v1699 = vcosq.f32.pop %v1697
    %v1700 = vsinq.f32.pop %v1697
    %vm1701 = vweird.f32 %v155
    %v1702 = vand.u32 %v1698, 3
    %vm1703 = vcmp.lt.s32.totalorder %v1702, 2
    %vm1704 = vcmp.eq.s32.totalorder %v1702, 0
    %v1705 = vxor.u32 %v1700, 2147483648
    %v1706 = vsel %vm1704, %v1699, %v1705
    %vm1707 = vcmp.eq.s32.totalorder %v1702, 2
    %v1708 = vxor.u32 %v1699, 2147483648
    %v1709 = vsel %vm1707, %v1708, %v1700
    %v1710 = vsel %vm1703, %v1706, %v1709
    %v1711 = vsel %vm1701, nan, %v1710
    %v1712 = vand.u32 2147483647, %v156
    %vm1713 = vcmp.le.f32.partialorder %v1712, 0.7853982
    %vm1714 = vcmp.lt.s32.totalorder %v156, 0
    %v1715 = vand.u32 %v156, 2139095040
    %v1716 = vshrl.u32 %v1715, 23
    %v1717 = vsub.s32 %v1716, 127
    %v1718 = vand.u32 2147483647, %v156
    %v1719 = vand.u32 %v1718, 8388607
    %v1720 = vor.u32 %v1719, 8388608
    %v1721 = vsub.s32 0, %v1720
    %v1722 = vadd.s32 %v1717, 1
    %vm1723 = vcmp.gt.s32.totalorder %v1722, 0
    %v1724 = vsel %vm1723, %v1722, 0
    %v1725 = vshrl.u32 %v1724, 5
    %v1726 = vand.u32 %v1724, 31
    %v1727 = vsub.s32 32, %v1726
    %v1728 = vshrl.u32 683565275, %v1727
    %v1729 = vshll.u32 683565275, %v1726
    %v1730 = vshrl.u32 2475754826, %v1727
    %v1731 = vor.u32 %v1729, %v1730
    %v1732 = vshll.u32 2475754826, %v1726
    %v1733 = vshrl.u32 2131351028, %v1727
    %v1734 = vor.u32 %v1732, %v1733
    %v1735 = vshll.u32 2131351028, %v1726
    %v1736 = vshrl.u32 2102212464, %v1727
    %v1737 = vor.u32 %v1735, %v1736
    %v1738 = vshll.u32 2102212464, %v1726
    %v1739 = vshrl.u32 920167782, %v1727
    %v1740 = vor.u32 %v1738, %v1739
    %v1741 = vshll.u32 920167782, %v1726
    %v1742 = vshrl.u32 1326507024, %v1727
    %v1743 = vor.u32 %v1741, %v1742
    %vm1744 = vcmp.lt.s32.totalorder %v1725, 1
    %vm1745 = vcmp.lt.s32.totalorder %v1725, 2
    %vm1746 = vcmp.lt.s32.totalorder %v1725, 3
    %vm1747 = vcmp.lt.s32.totalorder %v1725, 4
    %v1748 = vsel %vm1744, %v1728, %v1731
    %v1749 = vsel %vm1747, %v1737, 2102212464
    %v1750 = vsel %vm1746, %v1734, %v1749
    %v1751 = vsel %vm1745, %v1748, %v1750
    %v1752 = vsel %vm1744, %v1731, %v1734
    %v1753 = vsel %vm1747, %v1740, 920167782
    %v1754 = vsel %vm1746, %v1737, %v1753
    %v1755 = vsel %vm1745, %v1752, %v1754
    %v1756 = vsel %vm1744, %v1734, %v1737
    %v1757 = vsel %vm1747, %v1743, 1326507024
    %v1758 = vsel %vm1746, %v1740, %v1757
    %v1759 = vsel %vm1745, %v1756, %v1758
    %v1760 = vshll.u32 %v1720, 8
    %v1761 = vmul.u32.u64.compose %v1760, %v1759
    %v1762 = vextract.low.u32 %v1761
    %v1763 = vextract.high.u32 %v1761
    %v1764 = vmul.u32.u64.compose %v1760, %v1755
    %v1765 = vextract.low.u32 %v1764
    %v1766 = vextract.high.u32 %v1764
    %v1767 = vmul.u32 %v1760, %v1751
    %v1768 = vadd.s32 %v1763, %v1765
    %vm1769 = vc.u32 %v1763, %v1765
    %v1770 = vadd.s32 %v1766, 1
    %v1771 = vsel %vm1769, %v1770, %v1766
    %v1772 = vadd.s32 %v1767, %v1771
    %v1773 = vadd.s32 %v1772, 536870912
    %v1774 = vshrl.u32 %v1773, 30
    %v1775 = vshll.u32 %v1774, 30
    %v1776 = vsub.s32 %v1772, %v1775
    %vm1777 = vcmp.lt.s32.totalorder %v1776, 0
    %v1778 = vsub.s32 0, %v1776
    %v1779 = vsel %vm1777, %v1778, %v1776
    %v1780 = vclz %v1779
    %v1781 = vsub.s32 %v1780, 2
    %vm1782 = vcmp.gt.s32.totalorder 0, %v1781
    %v1783 = vsel %vm1782, 0, %v1781
    %v1784 = vsub.s32 32, %v1783
    %v1785 = vshll.u32 %v1776, %v1783
    %v1786 = vshrl.u32 %v1768, %v1784
    %v1787 = vor.u32 %v1785, %v1786
    %v1788 = vsub.s32 4294967266, %v1783
    %v1789 = vadd.s32 %v1788, 127
    %v1790 = vshll.u32 %v1789, 23
    %v1791 = vor.u32 4788187, %v1790
    %v1792 = vand.u32 2147483647, %v1791
    %v1794 = vcvt.s32.f32 %v1787
    %v1795 = vmul.f32 %v1794, %v1792
    %v1796 = vxor.u32 %v1795, 2147483648
    %v1797 = vsel %vm1714, %v1796, %v1795
    %v1798 = vsub.s32 4, %v1774
    %v1799 = vsel %vm1714, %v1798, %v1774
    %v1800 = vsel %vm1713, %v156, %v1797
    %v1801 = vsel %vm1713, 0, %v1799
    %v1802 = vcosq.f32.pop %v1800
    %v1803 = vsinq.f32.pop %v1800
    %vm1804 = vweird.f32 %v156
    %v1805 = vand.u32 %v1801, 3
    %vm1806 = vcmp.lt.s32.totalorder %v1805, 2
    %vm1807 = vcmp.eq.s32.totalorder %v1805, 0
    %v1808 = vxor.u32 %v1803, 2147483648
    %v1809 = vsel %vm1807, %v1802, %v1808
    %vm1810 = vcmp.eq.s32.totalorder %v1805, 2
    %v1811 = vxor.u32 %v1802, 2147483648
    %v1812 = vsel %vm1810, %v1811, %v1803
    %v1813 = vsel %vm1806, %v1809, %v1812
    %v1814 = vsel %vm1804, nan, %v1813
    %v1815 = vsel %vm158, 1, 0
    %v1816 = vlaneseq
    %v1817 = vshrl.u32 %v1816, 7
    %v1818 = vsub.s32 0, %v1817
    %v1819 = vrot.slane %v1815, %v1818
    %v1820 = vlaneseq
    %v1821 = vshrl.u32 %v1820, 7
    %v1822 = vsub.s32 1, %v1821
    %v1823 = vrot.slane %v1815, %v1822
    %v1824 = vlaneseq
    %v1825 = vshrl.u32 %v1824, 7
    %v1826 = vsub.s32 2, %v1825
    %v1827 = vrot.slane %v1815, %v1826
    %v1828 = vlaneseq
    %v1829 = vshrl.u32 %v1828, 7
    %v1830 = vsub.s32 3, %v1829
    %v1831 = vrot.slane %v1815, %v1830
    %v1832 = vlaneseq
    %v1833 = vshrl.u32 %v1832, 7
    %v1834 = vsub.s32 4, %v1833
    %v1835 = vrot.slane %v1815, %v1834
    %v1836 = vlaneseq
    %v1837 = vshrl.u32 %v1836, 7
    %v1838 = vsub.s32 5, %v1837
    %v1839 = vrot.slane %v1815, %v1838
    %v1840 = vlaneseq
    %v1841 = vshrl.u32 %v1840, 7
    %v1842 = vsub.s32 6, %v1841
    %v1843 = vrot.slane %v1815, %v1842
    %v1844 = vlaneseq
    %v1845 = vshrl.u32 %v1844, 7
    %v1846 = vsub.s32 7, %v1845
    %v1847 = vrot.slane %v1815, %v1846
    %vm1848 = vcmp.eq.s32.totalorder %v1819, 1
    %vm1849 = vcmp.eq.s32.totalorder %v1823, 1
    %vm1850 = vcmp.eq.s32.totalorder %v1827, 1
    %vm1851 = vcmp.eq.s32.totalorder %v1831, 1
    %vm1852 = vcmp.eq.s32.totalorder %v1835, 1
    %vm1853 = vcmp.eq.s32.totalorder %v1839, 1
    %vm1854 = vcmp.eq.s32.totalorder %v1843, 1
    %vm1855 = vcmp.eq.s32.totalorder %v1847, 1
    %v1856 = vsel %vm1848, %v262, %v1093
    %v1857 = vsel %vm1849, %v366, %v1196
    %v1858 = vsel %vm1850, %v470, %v1299
    %v1859 = vsel %vm1851, %v574, %v1402
    %v1860 = vsel %vm1852, %v678, %v1505
    %v1861 = vsel %vm1853, %v782, %v1608
    %v1862 = vsel %vm1854, %v886, %v1711
    %v1863 = vsel %vm1855, %v990, %v1814
    %1864 = vst [vmem:[#allocation8] sm:$0xff] %v1856
    %1865 = vst [vmem:[#allocation8 + $0x8] sm:$0xff] %v1857
    %1866 = vst [vmem:[#allocation8 + $0x10] sm:$0xff] %v1858
    %1867 = vst [vmem:[#allocation8 + $0x18] sm:$0xff] %v1859
    %1868 = vst [vmem:[#allocation8 + $0x20] sm:$0xff] %v1860
    %1869 = vst [vmem:[#allocation8 + $0x28] sm:$0xff] %v1861
    %1870 = vst [vmem:[#allocation8 + $0x30] sm:$0xff] %v1862
    %1871 = vst [vmem:[#allocation8 + $0x38] sm:$0xff] %v1863
    %1872 = vst [vmem:[#allocation8 + $0x40] sm:$0xff] %v1856
    %1873 = vst [vmem:[#allocation8 + $0x48] sm:$0xff] %v1857
    %1874 = vst [vmem:[#allocation8 + $0x50] sm:$0xff] %v1858
    %1875 = vst [vmem:[#allocation8 + $0x58] sm:$0xff] %v1859
    %1876 = vst [vmem:[#allocation8 + $0x60] sm:$0xff] %v1860
    %1877 = vst [vmem:[#allocation8 + $0x68] sm:$0xff] %v1861
    %1878 = vst [vmem:[#allocation8 + $0x70] sm:$0xff] %v1862
    %1879 = vst [vmem:[#allocation8 + $0x78] sm:$0xff] %v1863
    // Predicated region
    $region26: #{tpu_custom_call.1} parent=1 // pred_check
      _
    $region27: #{tpu_custom_call.1} parent=1 // pred_check_branch
      %1881 = sbr.rel (0) target = $region29
    $region28: #{tpu_custom_call.1} parent=1 // pred_region
      %s1883 = ssub.s32 2048, 2048
      %1884 = vsyncadd [#allocation4], %s1883
      %s1885 = sshll.u32 [#allocation8], 4
      %s1886 = int_to_ptr.vmem [resolvable:$true] %s1885
      %1891 = dma.vmem_to_hbm [thread:$0]  %s1886, 2048, %s3, [#allocation4], 1024, 1024, 64
    $region29: #{tpu_custom_call.1} parent=1 // pred_fallthru
      _
    // Predicated region
    $region30: #{tpu_custom_call.1} parent=1 // pred_check
      _
    $region31: #{tpu_custom_call.1} parent=1 // pred_check_branch
      %1893 = sbr.rel (0) target = $region33
    $region32: #{tpu_custom_call.1} parent=1 // pred_region
      %1894 = dma.done [#allocation4], 2048
    $region33: #{tpu_custom_call.1} parent=1 // pred_fallthru
      _
    %1895 = vsyncpa [#allocation3], 1
    %1896 = vsyncpa [#allocation6], 1
    %1897 = vsyncpa [#allocation4], 1

</llo_original>
